<compile_context>
chip_gen: v5e
topology: v5e:2x2
jax: 0.10.0
libtpu: 0.0.40
codegen_flags: <defaults>
</compile_context>

<pallas_src>
from math import pi

import numpy as np
import jax
import jax.numpy as jnp
from jax.experimental import pallas as pl
from jax.experimental.pallas import tpu as pltpu


_BLK = 8  # sublane alignment of per-pixel parameter blocks


# ----------------------------------------------------------------------------
# Kernel 1: fused ParamSeter + dual-half per-pixel MLP + spe_lib projection
# ----------------------------------------------------------------------------

def _make_fused_kernel(channels, layer_offsets, half_pad):
    """channels: MLP channel list.  layer_offsets[l] = (bias_off, weight_off, nco_pad)
    row offsets inside ONE padded parameter half.  half_pad = padded rows per half."""
    num_layers = len(channels) - 1

    def kernel(xct_ref, tiles_ref, w1_ref, b1_ref, w3_ref, b3_ref, splib_ref,
               out_ref):
        # ---- ParamSeter: relu(3x3 conv) -> relu(1x1 conv), channels-major ------
        # xct: [C*9, L] (already expanded to full-resolution lanes, L = bs*h*w)
        h1 = jnp.dot(w1_ref[...], xct_ref[...],
                     preferred_element_type=jnp.float32) + b1_ref[...]
        h1 = jnp.maximum(h1, 0.0)                                 # [d_pad, L]
        pfull = jnp.dot(w3_ref[...], h1,
                        preferred_element_type=jnp.float32) + b3_ref[...]
        pfull = jnp.maximum(pfull, 0.0)                           # [2*half_pad, L]

        # ---- place the two parameter halves side by side on the lane axis ------
        #   lanes [0, L)  -> half 1 (feeds ref2),  lanes [L, 2L) -> half 2 (feeds ref3)
        pboth = jnp.concatenate([pfull[:half_pad, :], pfull[half_pad:, :]],
                                axis=1)                           # [half_pad, 2L]
        tiles = tiles_ref[...]
        x = jnp.concatenate([tiles, tiles], axis=1)               # [nc0, 2L]

        # ---- per-pixel MLP: unrolled broadcast-multiply-add chain on the VPU ----
        # All slices below start on multiples of 8 rows (blocks were padded on host).
        for l in range(num_layers):
            nci = channels[l]
            boff, woff, nco_pad = layer_offsets[l]
            acc = pboth[boff:boff + nco_pad, :]                   # aligned bias block
            for i in range(nci):
                wblk = pboth[woff + i * nco_pad:woff + (i + 1) * nco_pad, :]
                acc = acc + x[i:i + 1, :] * wblk
            if l < num_layers - 1:
                x = jnp.where(acc > 0, acc, 0.01 * acc)           # leaky_relu(0.01)
            else:
                x = 0.1 * jnp.tanh(acc)                           # EUP

        # ---- shared spectral-library projection: one lane-dense MXU matmul ------
        out_ref[...] = jnp.dot(splib_ref[...], x,
                               preferred_element_type=jnp.float32)  # [C_out, 2L]

    return kernel


# ----------------------------------------------------------------------------
# Kernel 2: fused residual stage (ref2 / ref3 / add), batched over (c, b)
# ----------------------------------------------------------------------------

def _refres_kernel(o1_ref, o2_ref, hyp_ref, out_ref):
    """o1/o2: [G, h, w] with G = spe_channel*bs; hyp: [w, W2]; out: [G, h, W2].
       ref2 = o1 @ hyp ; ref3[g] = o2[g] @ ref2[g] ; out = ref2 + ref3."""
    G = o1_ref.shape[0]
    hyp_b = jnp.broadcast_to(hyp_ref[...], (G,) + hyp_ref.shape)   # [G, w, W2]
    ref2 = jnp.einsum('gyx,gxw->gyw', o1_ref[...], hyp_b,
                      preferred_element_type=jnp.float32)
    # Contracts o2's last (w) axis against ref2's h axis — exactly the reference
    # torch.matmul(out2, ref2) semantics, which require h == w (asserted on host).
    ref3 = jnp.einsum('gyx,gxw->gyw', o2_ref[...], ref2,
                      preferred_element_type=jnp.float32)
    out_ref[...] = ref2 + ref3


# ----------------------------------------------------------------------------
# Glue: position encoding, im2col, channel/split bookkeeping (plain JAX, jitted)
# ----------------------------------------------------------------------------

def get_coords(bs, h, w, k):
    """Matches _get_coords(..., ds=float(k), 'cosine')."""
    coords = []
    f = float(k)
    x = jnp.arange(w, dtype=jnp.float32)
    y = jnp.arange(h, dtype=jnp.float32)
    while f > 1:
        xc = jnp.cos(2.0 * pi * jnp.remainder(x, f) / f)
        xs = jnp.sin(2.0 * pi * jnp.remainder(x, f) / f)
        yc = jnp.cos(2.0 * pi * jnp.remainder(y, f) / f)
        ys = jnp.sin(2.0 * pi * jnp.remainder(y, f) / f)
        xc_m = jnp.broadcast_to(xc.reshape(1, 1, 1, w), (bs, 1, h, w))
        xs_m = jnp.broadcast_to(xs.reshape(1, 1, 1, w), (bs, 1, h, w))
        yc_m = jnp.broadcast_to(yc.reshape(1, 1, h, 1), (bs, 1, h, w))
        ys_m = jnp.broadcast_to(ys.reshape(1, 1, h, 1), (bs, 1, h, w))
        coords.append(jnp.concatenate([xc_m, xs_m, yc_m, ys_m], axis=1))
        f = f // 2
    return jnp.concatenate(coords, axis=1)


def im2col_3x3_reflect_t(x):
    """x: [bs, C, H, W] -> [C*9, bs*H*W], rows ordered (C, ky, kx), cols (b, y, x)."""
    bs, C, H, W = x.shape
    xp = jnp.pad(x, ((0, 0), (0, 0), (1, 1), (1, 1)), mode='reflect')
    patches = []
    for ky in range(3):
        for kx in range(3):
            patches.append(xp[:, :, ky:ky + H, kx:kx + W])        # [bs, C, H, W]
    pat = jnp.stack(patches, axis=2)                              # [bs, C, 9, H, W]
    return jnp.transpose(pat, (1, 2, 0, 3, 4)).reshape(C * 9, bs * H * W)


def make_channels_and_splits(downscale_factor, width, depth, lib_num):
    input_channel = 4 * downscale_factor                          # 'cosine' encoding
    channels = [input_channel] + [width] * (depth - 1) + [lib_num]
    splits = {'biases': [], 'weights': []}
    idx = 0
    for layer in range(len(channels) - 1):
        nc_in, nc_out = channels[layer], channels[layer + 1]
        splits['biases'].append((idx, idx + nc_out))
        idx += nc_out
        splits['weights'].append((idx, idx + nc_out * nc_in))
        idx += nc_out * nc_in
    num_params = idx * 2
    return channels, splits, num_params


def make_padded_param_layout(channels, splits, num_params):
    """Row permutation + validity mask mapping the ParamSeter output rows onto an
    8-sublane-aligned, per-block zero-padded layout (both halves)."""
    half = num_params // 2
    perm, valid = [], []
    layer_offsets = []
    off = 0
    for l in range(len(channels) - 1):
        nci, nco = channels[l], channels[l + 1]
        nco_pad = ((nco + _BLK - 1) // _BLK) * _BLK
        bstart, _ = splits['biases'][l]
        wstart, _ = splits['weights'][l]
        bias_off = off
        for r in range(nco_pad):
            perm.append(bstart + r if r < nco else 0)
            valid.append(1.0 if r < nco else 0.0)
        off += nco_pad
        weight_off = off
        for i in range(nci):
            for r in range(nco_pad):
                perm.append(wstart + i * nco + r if r < nco else 0)
                valid.append(1.0 if r < nco else 0.0)
            off += nco_pad
        layer_offsets.append((bias_off, weight_off, nco_pad))
    half_pad = off
    perm = perm + [p + half if v > 0 else 0 for p, v in zip(perm, valid)]
    valid = valid + valid
    return (np.asarray(perm, np.int32), np.asarray(valid, np.float32),
            layer_offsets, half_pad)


# ----------------------------------------------------------------------------
# Forward pass
# ----------------------------------------------------------------------------

def reslearner_forward(inp, hyper_linear, spe_lib, params, cfg):
    """inp: [bs, feature_nc, h_lr, w_lr] -> residual [bs, spe_channel, h, W2]."""
    bs, C, h_lr, w_lr = inp.shape
    k = int(2 ** cfg['downscale_factor'])
    h, w = h_lr * k, w_lr * k
    # torch.matmul(out2, ref2) in the reference contracts out2's w axis against
    # ref2's h axis, which is only well defined for square outputs.
    assert h == w, 'ResGenerator residual stage requires h == w'
    L = bs * h * w
    spe_channel = cfg['output_nc']
    channels = cfg['channels']
    layer_offsets = cfg['layer_offsets']
    half_pad = cfg['half_pad']
    lib_pad = layer_offsets[-1][2]
    num_layers = len(channels) - 1

    # --- position-encoding tiles, lane order = full-resolution (b, y, x) --------
    coords = get_coords(bs, h, w, k)                               # [bs, nc0, h, w]
    nc0 = coords.shape[1]
    tiles = jnp.transpose(coords, (1, 0, 2, 3)).reshape(nc0, L)

    # --- im2col of the LR features, expanded to full-resolution lanes -----------
    xct = im2col_3x3_reflect_t(inp)                                # [C*9, bs*h_lr*w_lr]
    xct4 = xct.reshape(C * 9, bs, h_lr, w_lr)
    xct_exp = jnp.broadcast_to(
        xct4[:, :, :, None, :, None],
        (C * 9, bs, h_lr, k, w_lr, k)).reshape(C * 9, L)

    # --- ParamSeter weights: matmul form + 8-aligned, zero-padded param blocks --
    w1, b1, w3, b3 = params['w1'], params['b1'], params['w3'], params['b3']
    d = w1.shape[0]
    d_pad = ((d + _BLK - 1) // _BLK) * _BLK
    w1p = jnp.pad(w1.reshape(d, C * 9), ((0, d_pad - d), (0, 0)))  # [d_pad, C*9]
    b1p = jnp.pad(b1.reshape(d, 1), ((0, d_pad - d), (0, 0)))      # [d_pad, 1]
    perm, valid = cfg['perm'], cfg['valid']
    w3p = jnp.take(w3.reshape(cfg['num_params'], d), perm, axis=0) * valid[:, None]
    w3p = jnp.pad(w3p, ((0, 0), (0, d_pad - d)))                   # [2*half_pad, d_pad]
    b3p = (jnp.take(b3, perm) * valid).reshape(-1, 1)              # [2*half_pad, 1]
    splib_p = jnp.pad(spe_lib, ((0, 0), (0, lib_pad - spe_lib.shape[1])))

    # --- kernel 1: fused ParamSeter + dual-half per-pixel MLP -------------------
    L2 = 2 * L
    mlp_flops = sum(2 * channels[l] * layer_offsets[l][2] * L2
                    for l in range(num_layers))
    flops1 = (2 * d_pad * C * 9 * L + 2 * (2 * half_pad) * d_pad * L
              + mlp_flops + 2 * spe_channel * lib_pad * L2)
    bytes1 = 4 * (xct_exp.size + tiles.size + w1p.size + b1p.size + w3p.size
                  + b3p.size + splib_p.size + spe_channel * L2)
    vmem = pl.BlockSpec(memory_space=pltpu.MemorySpace.VMEM)
    out_both = pl.pallas_call(
        _make_fused_kernel(channels, layer_offsets, half_pad),
        out_shape=jax.ShapeDtypeStruct((spe_channel, L2), jnp.float32),
        in_specs=[vmem] * 7,
        out_specs=vmem,
        cost_estimate=pl.CostEstimate(flops=int(flops1),
                                      transcendentals=int(lib_pad * L2),
                                      bytes_accessed=int(bytes1)),
    )(xct_exp, tiles, w1p, b1p, w3p, b3p, splib_p)

    # --- kernel 2: fused ref2 / ref3 / residual ----------------------------------
    # lanes of out_both are already in (b, y, x) image order, so building the
    # [G = spe_channel*bs, h, w] batched view is a pure reshape (no transpose).
    G = spe_channel * bs
    o1g = out_both[:, :L].reshape(G, h, w)                         # half 1 -> ref2
    o2g = out_both[:, L:].reshape(G, h, w)                         # half 2 -> ref3
    W2 = hyper_linear.shape[1]
    flops2 = 4 * G * h * w * W2 + G * h * W2
    bytes2 = 4 * (2 * G * h * w + hyper_linear.size + G * h * W2)
    res_g = pl.pallas_call(
        _refres_kernel,
        out_shape=jax.ShapeDtypeStruct((G, h, W2), jnp.float32),
        in_specs=[vmem] * 3,
        out_specs=vmem,
        cost_estimate=pl.CostEstimate(flops=int(flops2), transcendentals=0,
                                      bytes_accessed=int(bytes2)),
    )(o1g, o2g, hyper_linear)

    # g = (c, b)  ->  [bs, spe_channel, h, W2]
    return jnp.transpose(res_g.reshape(spe_channel, bs, h, W2), (1, 0, 2, 3))


# ----------------------------------------------------------------------------
# Main
# ----------------------------------------------------------------------------

if __name__ == "__main__":
    # opt (small): downscale_factor=2, ngf=8, crop_size=16, abun_num=6, mlp_depth=3
    downscale_factor = 2
    ngf = 8
    crop_size = 16
    abun_num = 6
    mlp_depth = 3
    output_nc = 8

    feature_nc = 2 ** (downscale_factor - 1) * ngf       # 16
    k = 2 ** downscale_factor                            # 4
    input_size = crop_size // k                          # 4 (= h_lr = w_lr)
    nf = ngf // 2                                        # 4

    channels, splits, num_params = make_channels_and_splits(
        downscale_factor, nf, mlp_depth, abun_num)       # channels=[8,4,4,6], 172
    perm, valid, layer_offsets, half_pad = make_padded_param_layout(
        channels, splits, num_params)

    cfg = {'downscale_factor': downscale_factor, 'channels': channels,
           'num_params': num_params, 'output_nc': output_nc,
           'perm': perm, 'valid': valid,
           'layer_offsets': layer_offsets, 'half_pad': half_pad}

    key = jax.random.PRNGKey(0)
    k1, k2, k3, k4, k5, k6, k7 = jax.random.split(key, 7)

    # ParamSeter parameters (deterministic synthetic init)
    w1 = jax.random.normal(k1, (nf, feature_nc, 3, 3), jnp.float32) * 0.1
    b1 = jax.random.normal(k2, (nf,), jnp.float32) * 0.1
    # TODO(synk): PyTorch spectral_norm uses a power-iteration sigma estimate; here the
    # conv1 weight is pre-normalized by the exact largest singular value (converged value).
    sigma = jnp.linalg.svd(w1.reshape(nf, -1), compute_uv=False)[0]
    w1 = w1 / sigma
    w3 = jax.random.normal(k3, (num_params, nf, 1, 1), jnp.float32) * 0.1
    b3 = jax.random.normal(k4, (num_params,), jnp.float32) * 0.1

    # Inputs
    bs = 2
    x = jax.random.normal(k5, (bs, feature_nc, input_size, input_size), jnp.float32)
    h_full = input_size * k                              # 16
    abun_feature = jax.random.normal(k6, (h_full, h_full), jnp.float32) * 0.1
    spe_lib = jax.random.normal(k7, (output_nc, abun_num), jnp.float32)

    @jax.jit
    def run(x_, abun_, slib_, w1_, b1_, w3_, b3_):
        params_ = {'w1': w1_, 'b1': b1_, 'w3': w3_, 'b3': b3_}
        return reslearner_forward(x_, abun_, slib_, params_, cfg)

    out = run(x, abun_feature, spe_lib, w1, b1, w3, b3)
    out = jax.block_until_ready(out)
    assert out.shape == (bs, output_nc, h_full, h_full), out.shape
    assert bool(jnp.all(jnp.isfinite(out)))
    print("KERNEL_OK")
</pallas_src>

<mosaic_0001>
module attributes {stable_mosaic.version = 11 : i64} {
  func.func @kernel(%arg0: memref<144x512xf32, #tpu.memory_space<vmem>>, %arg1: memref<8x512xf32, #tpu.memory_space<vmem>>, %arg2: memref<8x144xf32, #tpu.memory_space<vmem>>, %arg3: memref<8x1xf32, #tpu.memory_space<vmem>>, %arg4: memref<304x8xf32, #tpu.memory_space<vmem>>, %arg5: memref<304x1xf32, #tpu.memory_space<vmem>>, %arg6: memref<8x8xf32, #tpu.memory_space<vmem>>, %arg7: memref<8x1024xf32, #tpu.memory_space<vmem>>) attributes {dimension_semantics = [], scalar_prefetch = 0 : i64, scratch_operands = 0 : i64, tpu.core_type = #tpu.core_type<tc>} {
    %c0 = arith.constant 0 : index
    %c0_0 = arith.constant 0 : index
    %0 = vector.load %arg2[%c0, %c0_0] : memref<8x144xf32, #tpu.memory_space<vmem>>, vector<8x144xf32>
    %c0_1 = arith.constant 0 : index
    %c0_2 = arith.constant 0 : index
    %1 = vector.load %arg0[%c0_1, %c0_2] : memref<144x512xf32, #tpu.memory_space<vmem>>, vector<144x512xf32>
    %cst = arith.constant dense<0.000000e+00> : vector<8x512xf32>
    %2 = tpu.matmul %0, %1, %cst {dimension_numbers = #tpu.dot_dimension_numbers<[1], [0], [0], [1], [0, 0, 1, 1], [], []>} : vector<8x144xf32>, vector<144x512xf32>, vector<8x512xf32> -> vector<8x512xf32>
    %c0_3 = arith.constant 0 : index
    %c0_4 = arith.constant 0 : index
    %3 = vector.load %arg3[%c0_3, %c0_4] : memref<8x1xf32, #tpu.memory_space<vmem>>, vector<8x1xf32>
    %4 = vector.broadcast %3 : vector<8x1xf32> to vector<8x512xf32>
    %5 = arith.addf %2, %4 : vector<8x512xf32>
    %cst_5 = arith.constant 0.000000e+00 : f32
    %6 = vector.broadcast %cst_5 : f32 to vector<8x512xf32>
    %7 = arith.maximumf %5, %6 : vector<8x512xf32>
    %c0_6 = arith.constant 0 : index
    %c0_7 = arith.constant 0 : index
    %8 = vector.load %arg4[%c0_6, %c0_7] : memref<304x8xf32, #tpu.memory_space<vmem>>, vector<304x8xf32>
    %cst_8 = arith.constant dense<0.000000e+00> : vector<304x512xf32>
    %9 = tpu.matmul %8, %7, %cst_8 {dimension_numbers = #tpu.dot_dimension_numbers<[1], [0], [0], [1], [0, 0, 1, 1], [], []>} : vector<304x8xf32>, vector<8x512xf32>, vector<304x512xf32> -> vector<304x512xf32>
    %c0_9 = arith.constant 0 : index
    %c0_10 = arith.constant 0 : index
    %10 = vector.load %arg5[%c0_9, %c0_10] : memref<304x1xf32, #tpu.memory_space<vmem>>, vector<304x1xf32>
    %11 = vector.broadcast %10 : vector<304x1xf32> to vector<304x512xf32>
    %12 = arith.addf %9, %11 : vector<304x512xf32>
    %cst_11 = arith.constant 0.000000e+00 : f32
    %13 = vector.broadcast %cst_11 : f32 to vector<304x512xf32>
    %14 = arith.maximumf %12, %13 : vector<304x512xf32>
    %15 = vector.extract_strided_slice %14 {offsets = [0, 0], sizes = [152, 512], strides = [1, 1]} : vector<304x512xf32> to vector<152x512xf32>
    %16 = vector.extract_strided_slice %14 {offsets = [152, 0], sizes = [152, 512], strides = [1, 1]} : vector<304x512xf32> to vector<152x512xf32>
    %17 = tpu.concatenate %15, %16 in 1 : vector<152x512xf32>, vector<152x512xf32> -> vector<152x1024xf32>
    %c0_12 = arith.constant 0 : index
    %c0_13 = arith.constant 0 : index
    %18 = vector.load %arg1[%c0_12, %c0_13] : memref<8x512xf32, #tpu.memory_space<vmem>>, vector<8x512xf32>
    %19 = tpu.concatenate %18, %18 in 1 : vector<8x512xf32>, vector<8x512xf32> -> vector<8x1024xf32>
    %20 = vector.extract_strided_slice %17 {offsets = [0, 0], sizes = [8, 1024], strides = [1, 1]} : vector<152x1024xf32> to vector<8x1024xf32>
    %21 = vector.extract_strided_slice %17 {offsets = [8, 0], sizes = [8, 1024], strides = [1, 1]} : vector<152x1024xf32> to vector<8x1024xf32>
    %22 = vector.extract_strided_slice %19 {offsets = [0, 0], sizes = [1, 1024], strides = [1, 1]} : vector<8x1024xf32> to vector<1x1024xf32>
    %23 = vector.broadcast %22 : vector<1x1024xf32> to vector<8x1024xf32>
    %24 = arith.mulf %23, %21 : vector<8x1024xf32>
    %25 = arith.addf %20, %24 : vector<8x1024xf32>
    %26 = vector.extract_strided_slice %17 {offsets = [16, 0], sizes = [8, 1024], strides = [1, 1]} : vector<152x1024xf32> to vector<8x1024xf32>
    %27 = vector.extract_strided_slice %19 {offsets = [1, 0], sizes = [1, 1024], strides = [1, 1]} : vector<8x1024xf32> to vector<1x1024xf32>
    %28 = vector.broadcast %27 : vector<1x1024xf32> to vector<8x1024xf32>
    %29 = arith.mulf %28, %26 : vector<8x1024xf32>
    %30 = arith.addf %25, %29 : vector<8x1024xf32>
    %31 = vector.extract_strided_slice %17 {offsets = [24, 0], sizes = [8, 1024], strides = [1, 1]} : vector<152x1024xf32> to vector<8x1024xf32>
    %32 = vector.extract_strided_slice %19 {offsets = [2, 0], sizes = [1, 1024], strides = [1, 1]} : vector<8x1024xf32> to vector<1x1024xf32>
    %33 = vector.broadcast %32 : vector<1x1024xf32> to vector<8x1024xf32>
    %34 = arith.mulf %33, %31 : vector<8x1024xf32>
    %35 = arith.addf %30, %34 : vector<8x1024xf32>
    %36 = vector.extract_strided_slice %17 {offsets = [32, 0], sizes = [8, 1024], strides = [1, 1]} : vector<152x1024xf32> to vector<8x1024xf32>
    %37 = vector.extract_strided_slice %19 {offsets = [3, 0], sizes = [1, 1024], strides = [1, 1]} : vector<8x1024xf32> to vector<1x1024xf32>
    %38 = vector.broadcast %37 : vector<1x1024xf32> to vector<8x1024xf32>
    %39 = arith.mulf %38, %36 : vector<8x1024xf32>
    %40 = arith.addf %35, %39 : vector<8x1024xf32>
    %41 = vector.extract_strided_slice %17 {offsets = [40, 0], sizes = [8, 1024], strides = [1, 1]} : vector<152x1024xf32> to vector<8x1024xf32>
    %42 = vector.extract_strided_slice %19 {offsets = [4, 0], sizes = [1, 1024], strides = [1, 1]} : vector<8x1024xf32> to vector<1x1024xf32>
    %43 = vector.broadcast %42 : vector<1x1024xf32> to vector<8x1024xf32>
    %44 = arith.mulf %43, %41 : vector<8x1024xf32>
    %45 = arith.addf %40, %44 : vector<8x1024xf32>
    %46 = vector.extract_strided_slice %17 {offsets = [48, 0], sizes = [8, 1024], strides = [1, 1]} : vector<152x1024xf32> to vector<8x1024xf32>
    %47 = vector.extract_strided_slice %19 {offsets = [5, 0], sizes = [1, 1024], strides = [1, 1]} : vector<8x1024xf32> to vector<1x1024xf32>
    %48 = vector.broadcast %47 : vector<1x1024xf32> to vector<8x1024xf32>
    %49 = arith.mulf %48, %46 : vector<8x1024xf32>
    %50 = arith.addf %45, %49 : vector<8x1024xf32>
    %51 = vector.extract_strided_slice %17 {offsets = [56, 0], sizes = [8, 1024], strides = [1, 1]} : vector<152x1024xf32> to vector<8x1024xf32>
    %52 = vector.extract_strided_slice %19 {offsets = [6, 0], sizes = [1, 1024], strides = [1, 1]} : vector<8x1024xf32> to vector<1x1024xf32>
    %53 = vector.broadcast %52 : vector<1x1024xf32> to vector<8x1024xf32>
    %54 = arith.mulf %53, %51 : vector<8x1024xf32>
    %55 = arith.addf %50, %54 : vector<8x1024xf32>
    %56 = vector.extract_strided_slice %17 {offsets = [64, 0], sizes = [8, 1024], strides = [1, 1]} : vector<152x1024xf32> to vector<8x1024xf32>
    %57 = vector.extract_strided_slice %19 {offsets = [7, 0], sizes = [1, 1024], strides = [1, 1]} : vector<8x1024xf32> to vector<1x1024xf32>
    %58 = vector.broadcast %57 : vector<1x1024xf32> to vector<8x1024xf32>
    %59 = arith.mulf %58, %56 : vector<8x1024xf32>
    %60 = arith.addf %55, %59 : vector<8x1024xf32>
    %cst_14 = arith.constant 0.000000e+00 : f32
    %61 = vector.broadcast %cst_14 : f32 to vector<8x1024xf32>
    %62 = arith.cmpf ogt, %60, %61 : vector<8x1024xf32>
    %cst_15 = arith.constant 0.00999999977 : f32
    %63 = vector.broadcast %cst_15 : f32 to vector<8x1024xf32>
    %64 = arith.mulf %63, %60 : vector<8x1024xf32>
    %65 = arith.select %62, %60, %64 : vector<8x1024xi1>, vector<8x1024xf32>
    %66 = vector.extract_strided_slice %17 {offsets = [72, 0], sizes = [8, 1024], strides = [1, 1]} : vector<152x1024xf32> to vector<8x1024xf32>
    %67 = vector.extract_strided_slice %17 {offsets = [80, 0], sizes = [8, 1024], strides = [1, 1]} : vector<152x1024xf32> to vector<8x1024xf32>
    %68 = vector.extract_strided_slice %65 {offsets = [0, 0], sizes = [1, 1024], strides = [1, 1]} : vector<8x1024xf32> to vector<1x1024xf32>
    %69 = vector.broadcast %68 : vector<1x1024xf32> to vector<8x1024xf32>
    %70 = arith.mulf %69, %67 : vector<8x1024xf32>
    %71 = arith.addf %66, %70 : vector<8x1024xf32>
    %72 = vector.extract_strided_slice %17 {offsets = [88, 0], sizes = [8, 1024], strides = [1, 1]} : vector<152x1024xf32> to vector<8x1024xf32>
    %73 = vector.extract_strided_slice %65 {offsets = [1, 0], sizes = [1, 1024], strides = [1, 1]} : vector<8x1024xf32> to vector<1x1024xf32>
    %74 = vector.broadcast %73 : vector<1x1024xf32> to vector<8x1024xf32>
    %75 = arith.mulf %74, %72 : vector<8x1024xf32>
    %76 = arith.addf %71, %75 : vector<8x1024xf32>
    %77 = vector.extract_strided_slice %17 {offsets = [96, 0], sizes = [8, 1024], strides = [1, 1]} : vector<152x1024xf32> to vector<8x1024xf32>
    %78 = vector.extract_strided_slice %65 {offsets = [2, 0], sizes = [1, 1024], strides = [1, 1]} : vector<8x1024xf32> to vector<1x1024xf32>
    %79 = vector.broadcast %78 : vector<1x1024xf32> to vector<8x1024xf32>
    %80 = arith.mulf %79, %77 : vector<8x1024xf32>
    %81 = arith.addf %76, %80 : vector<8x1024xf32>
    %82 = vector.extract_strided_slice %17 {offsets = [104, 0], sizes = [8, 1024], strides = [1, 1]} : vector<152x1024xf32> to vector<8x1024xf32>
    %83 = vector.extract_strided_slice %65 {offsets = [3, 0], sizes = [1, 1024], strides = [1, 1]} : vector<8x1024xf32> to vector<1x1024xf32>
    %84 = vector.broadcast %83 : vector<1x1024xf32> to vector<8x1024xf32>
    %85 = arith.mulf %84, %82 : vector<8x1024xf32>
    %86 = arith.addf %81, %85 : vector<8x1024xf32>
    %cst_16 = arith.constant 0.000000e+00 : f32
    %87 = vector.broadcast %cst_16 : f32 to vector<8x1024xf32>
    %88 = arith.cmpf ogt, %86, %87 : vector<8x1024xf32>
    %cst_17 = arith.constant 0.00999999977 : f32
    %89 = vector.broadcast %cst_17 : f32 to vector<8x1024xf32>
    %90 = arith.mulf %89, %86 : vector<8x1024xf32>
    %91 = arith.select %88, %86, %90 : vector<8x1024xi1>, vector<8x1024xf32>
    %92 = vector.extract_strided_slice %17 {offsets = [112, 0], sizes = [8, 1024], strides = [1, 1]} : vector<152x1024xf32> to vector<8x1024xf32>
    %93 = vector.extract_strided_slice %17 {offsets = [120, 0], sizes = [8, 1024], strides = [1, 1]} : vector<152x1024xf32> to vector<8x1024xf32>
    %94 = vector.extract_strided_slice %91 {offsets = [0, 0], sizes = [1, 1024], strides = [1, 1]} : vector<8x1024xf32> to vector<1x1024xf32>
    %95 = vector.broadcast %94 : vector<1x1024xf32> to vector<8x1024xf32>
    %96 = arith.mulf %95, %93 : vector<8x1024xf32>
    %97 = arith.addf %92, %96 : vector<8x1024xf32>
    %98 = vector.extract_strided_slice %17 {offsets = [128, 0], sizes = [8, 1024], strides = [1, 1]} : vector<152x1024xf32> to vector<8x1024xf32>
    %99 = vector.extract_strided_slice %91 {offsets = [1, 0], sizes = [1, 1024], strides = [1, 1]} : vector<8x1024xf32> to vector<1x1024xf32>
    %100 = vector.broadcast %99 : vector<1x1024xf32> to vector<8x1024xf32>
    %101 = arith.mulf %100, %98 : vector<8x1024xf32>
    %102 = arith.addf %97, %101 : vector<8x1024xf32>
    %103 = vector.extract_strided_slice %17 {offsets = [136, 0], sizes = [8, 1024], strides = [1, 1]} : vector<152x1024xf32> to vector<8x1024xf32>
    %104 = vector.extract_strided_slice %91 {offsets = [2, 0], sizes = [1, 1024], strides = [1, 1]} : vector<8x1024xf32> to vector<1x1024xf32>
    %105 = vector.broadcast %104 : vector<1x1024xf32> to vector<8x1024xf32>
    %106 = arith.mulf %105, %103 : vector<8x1024xf32>
    %107 = arith.addf %102, %106 : vector<8x1024xf32>
    %108 = vector.extract_strided_slice %17 {offsets = [144, 0], sizes = [8, 1024], strides = [1, 1]} : vector<152x1024xf32> to vector<8x1024xf32>
    %109 = vector.extract_strided_slice %91 {offsets = [3, 0], sizes = [1, 1024], strides = [1, 1]} : vector<8x1024xf32> to vector<1x1024xf32>
    %110 = vector.broadcast %109 : vector<1x1024xf32> to vector<8x1024xf32>
    %111 = arith.mulf %110, %108 : vector<8x1024xf32>
    %112 = arith.addf %107, %111 : vector<8x1024xf32>
    %113 = math.tanh %112 : vector<8x1024xf32>
    %cst_18 = arith.constant 1.000000e-01 : f32
    %114 = vector.broadcast %cst_18 : f32 to vector<8x1024xf32>
    %115 = arith.mulf %114, %113 : vector<8x1024xf32>
    %c0_19 = arith.constant 0 : index
    %c0_20 = arith.constant 0 : index
    %116 = vector.load %arg6[%c0_19, %c0_20] : memref<8x8xf32, #tpu.memory_space<vmem>>, vector<8x8xf32>
    %cst_21 = arith.constant dense<0.000000e+00> : vector<8x1024xf32>
    %117 = tpu.matmul %116, %115, %cst_21 {dimension_numbers = #tpu.dot_dimension_numbers<[1], [0], [0], [1], [0, 0, 1, 1], [], []>} : vector<8x8xf32>, vector<8x1024xf32>, vector<8x1024xf32> -> vector<8x1024xf32>
    %c0_22 = arith.constant 0 : index
    %c0_23 = arith.constant 0 : index
    %118 = vector.load %arg7[%c0_22, %c0_23] : memref<8x1024xf32, #tpu.memory_space<vmem>>, vector<8x1024xf32>
    tpu.vector_store %arg7[%c0_22, %c0_23], %117 {strides = array<i32>} : memref<8x1024xf32, #tpu.memory_space<vmem>>, vector<8x1024xf32>,
    return
  }
}

module attributes {stable_mosaic.version = 11 : i64} {
  func.func @_refres_kernel(%arg0: memref<16x16x16xf32, #tpu.memory_space<vmem>>, %arg1: memref<16x16x16xf32, #tpu.memory_space<vmem>>, %arg2: memref<16x16xf32, #tpu.memory_space<vmem>>, %arg3: memref<16x16x16xf32, #tpu.memory_space<vmem>>) attributes {dimension_semantics = [], scalar_prefetch = 0 : i64, scratch_operands = 0 : i64, tpu.core_type = #tpu.core_type<tc>} {
    %c0 = arith.constant 0 : index
    %c0_0 = arith.constant 0 : index
    %0 = vector.load %arg2[%c0, %c0_0] : memref<16x16xf32, #tpu.memory_space<vmem>>, vector<16x16xf32>
    %1 = vector.shape_cast %0 : vector<16x16xf32> to vector<1x16x16xf32>
    %2 = vector.broadcast %1 : vector<1x16x16xf32> to vector<16x16x16xf32>
    %c0_1 = arith.constant 0 : index
    %c0_2 = arith.constant 0 : index
    %c0_3 = arith.constant 0 : index
    %3 = vector.load %arg0[%c0_1, %c0_2, %c0_3] : memref<16x16x16xf32, #tpu.memory_space<vmem>>, vector<16x16x16xf32>
    "tpu.trace_start"() <{level = 10 : i32, message = "gyx,gxw->gyw"}> : () -> ()
    %cst = arith.constant dense<0.000000e+00> : vector<16x16x16xf32>
    %4 = tpu.matmul %3, %2, %cst {dimension_numbers = #tpu.dot_dimension_numbers<[2], [1], [1], [2], [0, 0, 0, 1, 1, 2], [0], [0]>} : vector<16x16x16xf32>, vector<16x16x16xf32>, vector<16x16x16xf32> -> vector<16x16x16xf32>
    "tpu.trace_stop"() : () -> ()
    %c0_4 = arith.constant 0 : index
    %c0_5 = arith.constant 0 : index
    %c0_6 = arith.constant 0 : index
    %5 = vector.load %arg1[%c0_4, %c0_5, %c0_6] : memref<16x16x16xf32, #tpu.memory_space<vmem>>, vector<16x16x16xf32>
    "tpu.trace_start"() <{level = 10 : i32, message = "gyx,gxw->gyw"}> : () -> ()
    %cst_7 = arith.constant dense<0.000000e+00> : vector<16x16x16xf32>
    %6 = tpu.matmul %5, %4, %cst_7 {dimension_numbers = #tpu.dot_dimension_numbers<[2], [1], [1], [2], [0, 0, 0, 1, 1, 2], [0], [0]>} : vector<16x16x16xf32>, vector<16x16x16xf32>, vector<16x16x16xf32> -> vector<16x16x16xf32>
    "tpu.trace_stop"() : () -> ()
    %7 = arith.addf %4, %6 : vector<16x16x16xf32>
    %c0_8 = arith.constant 0 : index
    %c0_9 = arith.constant 0 : index
    %c0_10 = arith.constant 0 : index
    %8 = vector.load %arg3[%c0_8, %c0_9, %c0_10] : memref<16x16x16xf32, #tpu.memory_space<vmem>>, vector<16x16x16xf32>
    tpu.vector_store %arg3[%c0_8, %c0_9, %c0_10], %7 {strides = array<i32>} : memref<16x16x16xf32, #tpu.memory_space<vmem>>, vector<16x16x16xf32>,
    return
  }
}

</mosaic_0001>

<llo_original>
// kernel: mul.1
$region0: #{mul.1}
  #allocation0 [shape = 's32[1]{0}', space=sflag, size = 0x4, scoped, tag = 'scoped memory for mul.1']
  %s0 = inlined_call_operand.vmem [shape: f32[304], index: 0, kind: input, shape index: {}]
  %s1 = inlined_call_operand.vmem [shape: f32[304], index: 1, kind: input, shape index: {}]
  %s2 = inlined_call_operand.vmem [shape: f32[304], index: 2, kind: output, shape index: {}]
  %v3 = vld [vmem:[%s0] sm:$0x7]
  %v4 = vld [vmem:[%s1] sm:$0x7]
  %5 = xla_tuple %v3, %v4
  %6 = xla_tuple %5
  %v7 = vmul.f32 %v3, %v4
  %8 = xla_tuple %v7
  %9 = vst [vmem:[%s2] sm:$0xf] %v7

// kernel: run.3
$region0: #{run.3}
  #allocation0 [shape = 'u32[]', space=smem, size = 0x4, offset = 0x4, fixed_abs, tag = 'smem constant byte address 0x4 - core index']
  #allocation1 [shape = 'u32[72,128]{1,0:T(1,128)}', space=vmem, size = 0x9000, scoped, tag = 'internal scratch']
  %s0 = inlined_call_operand.vmem [shape: f32[16,16,16], index: 0, kind: input, shape index: {}]
  %s1 = inlined_call_operand.vmem [shape: f32[16,16,16], index: 1, kind: input, shape index: {}]
  %s2 = inlined_call_operand.vmem [shape: f32[16,16], index: 2, kind: input, shape index: {}]
  %s3 = inlined_call_operand.vmem [shape: f32[16,16,16], index: 3, kind: output, shape index: {}]
  %s4 = sld [smem:[#allocation0]]
  $region22: #{run.3} parent=0
    _
  %s6 = ssub.s32 1, %s4
  %s7 = scalar_select 0, %s6, %s4
  // Predicated region
  $region2: #{run.3} parent=0 // pred_check
    _
  $region3: #{run.3} parent=0 // pred_check_branch
    %9 = sbr.rel (0) target = $region5
  $region4: #{run.3} parent=0 // pred_region
    _
  $region5: #{run.3} parent=0 // pred_fallthru
    _
  // Predicated region
  $region6: #{run.3} parent=0 // pred_check
    _
  $region7: #{run.3} parent=0 // pred_check_branch
    %11 = sbr.rel (0) target = $region9
  $region8: #{run.3} parent=0 // pred_region
    _
  $region9: #{run.3} parent=0 // pred_fallthru
    _
  // Predicated region
  $region10: #{run.3} parent=0 // pred_check
    _
  $region11: #{run.3} parent=0 // pred_check_branch
    %13 = sbr.rel (0) target = $region13
  $region12: #{run.3} parent=0 // pred_region
    _
  $region13: #{run.3} parent=0 // pred_fallthru
    _
  %v14 = vld [vmem:[%s2] sm:$0xff]
  %v15 = vld [vmem:[%s2 + $0x8] sm:$0xff]
  %v16 = vld [vmem:[%s0] sm:$0xff]
  %v17 = vld [vmem:[%s0 + $0x8] sm:$0xff]
  %v18 = vld [vmem:[%s0 + $0x10] sm:$0xff]
  %v19 = vld [vmem:[%s0 + $0x18] sm:$0xff]
  %v20 = vld [vmem:[%s0 + $0x20] sm:$0xff]
  %v21 = vld [vmem:[%s0 + $0x28] sm:$0xff]
  %v22 = vld [vmem:[%s0 + $0x30] sm:$0xff]
  %v23 = vld [vmem:[%s0 + $0x38] sm:$0xff]
  %v24 = vld [vmem:[%s0 + $0x40] sm:$0xff]
  %v25 = vld [vmem:[%s0 + $0x48] sm:$0xff]
  %v26 = vld [vmem:[%s0 + $0x50] sm:$0xff]
  %v27 = vld [vmem:[%s0 + $0x58] sm:$0xff]
  %v28 = vld [vmem:[%s0 + $0x60] sm:$0xff]
  %v29 = vld [vmem:[%s0 + $0x68] sm:$0xff]
  %v30 = vld [vmem:[%s0 + $0x70] sm:$0xff]
  %v31 = vld [vmem:[%s0 + $0x78] sm:$0xff]
  %v32 = vld [vmem:[%s0 + $0x80] sm:$0xff]
  %v33 = vld [vmem:[%s0 + $0x88] sm:$0xff]
  %v34 = vld [vmem:[%s0 + $0x90] sm:$0xff]
  %v35 = vld [vmem:[%s0 + $0x98] sm:$0xff]
  %v36 = vld [vmem:[%s0 + $0xa0] sm:$0xff]
  %v37 = vld [vmem:[%s0 + $0xa8] sm:$0xff]
  %v38 = vld [vmem:[%s0 + $0xb0] sm:$0xff]
  %v39 = vld [vmem:[%s0 + $0xb8] sm:$0xff]
  %v40 = vld [vmem:[%s0 + $0xc0] sm:$0xff]
  %v41 = vld [vmem:[%s0 + $0xc8] sm:$0xff]
  %v42 = vld [vmem:[%s0 + $0xd0] sm:$0xff]
  %v43 = vld [vmem:[%s0 + $0xd8] sm:$0xff]
  %v44 = vld [vmem:[%s0 + $0xe0] sm:$0xff]
  %v45 = vld [vmem:[%s0 + $0xe8] sm:$0xff]
  %v46 = vld [vmem:[%s0 + $0xf0] sm:$0xff]
  %v47 = vld [vmem:[%s0 + $0xf8] sm:$0xff]
  %vm48 = vcmask 130048
  %v50 = vsel %vm48, %v16, 0
  %v53 = vsel %vm48, %v17, 0
  %55 = vmatpush.msra.mxu0 0.0
  %56 = vmatpush.msra.mxu0 0.0
  %57 = vmatpush.msra.mxu0 0.0
  %58 = vmatpush.msra.mxu0 0.0
  %59 = vmatpush.msra.mxu0 0.0
  %60 = vmatpush.msra.mxu0 0.0
  %61 = vmatpush.msra.mxu0 0.0
  %62 = vmatpush.msra.mxu0 0.0
  %63 = vmatpush.msra.mxu0 0.0
  %64 = vmatpush.msra.mxu0 0.0
  %65 = vmatpush.msra.mxu0 0.0
  %66 = vmatpush.msra.mxu0 0.0
  %67 = vmatpush.msra.mxu0 0.0
  %68 = vmatpush.msra.mxu0 0.0
  %69 = vmatpush.msra.mxu0 %v15
  %70 = vmatpush.msra.mxu0 %v14
  %71 = vmatmul.f32.gmra.mxu0 %v50
  %v72 = vpop.f32.mrf.mxu0
  %v73 = vadd.f32 0.0, %v72
  %74 = vmatmul.f32.gmra.mxu0 %v53
  %v75 = vpop.f32.mrf.mxu0
  %v76 = vadd.f32 0.0, %v75
  %77 = vdwg.mxu0
  %v79 = vsel %vm48, %v18, 0
  %v82 = vsel %vm48, %v19, 0
  %84 = vmatpush.msra.mxu0 0.0
  %85 = vmatpush.msra.mxu0 0.0
  %86 = vmatpush.msra.mxu0 0.0
  %87 = vmatpush.msra.mxu0 0.0
  %88 = vmatpush.msra.mxu0 0.0
  %89 = vmatpush.msra.mxu0 0.0
  %90 = vmatpush.msra.mxu0 0.0
  %91 = vmatpush.msra.mxu0 0.0
  %92 = vmatpush.msra.mxu0 0.0
  %93 = vmatpush.msra.mxu0 0.0
  %94 = vmatpush.msra.mxu0 0.0
  %95 = vmatpush.msra.mxu0 0.0
  %96 = vmatpush.msra.mxu0 0.0
  %97 = vmatpush.msra.mxu0 0.0
  %98 = vmatpush.msra.mxu0 %v15
  %99 = vmatpush.msra.mxu0 %v14
  %100 = vmatmul.f32.gmra.mxu0 %v79
  %v101 = vpop.f32.mrf.mxu0
  %v102 = vadd.f32 0.0, %v101
  %103 = vmatmul.f32.gmra.mxu0 %v82
  %v104 = vpop.f32.mrf.mxu0
  %v105 = vadd.f32 0.0, %v104
  %106 = vdwg.mxu0
  %v108 = vsel %vm48, %v20, 0
  %v111 = vsel %vm48, %v21, 0
  %113 = vmatpush.msra.mxu0 0.0
  %114 = vmatpush.msra.mxu0 0.0
  %115 = vmatpush.msra.mxu0 0.0
  %116 = vmatpush.msra.mxu0 0.0
  %117 = vmatpush.msra.mxu0 0.0
  %118 = vmatpush.msra.mxu0 0.0
  %119 = vmatpush.msra.mxu0 0.0
  %120 = vmatpush.msra.mxu0 0.0
  %121 = vmatpush.msra.mxu0 0.0
  %122 = vmatpush.msra.mxu0 0.0
  %123 = vmatpush.msra.mxu0 0.0
  %124 = vmatpush.msra.mxu0 0.0
  %125 = vmatpush.msra.mxu0 0.0
  %126 = vmatpush.msra.mxu0 0.0
  %127 = vmatpush.msra.mxu0 %v15
  %128 = vmatpush.msra.mxu0 %v14
  %129 = vmatmul.f32.gmra.mxu0 %v108
  %v130 = vpop.f32.mrf.mxu0
  %v131 = vadd.f32 0.0, %v130
  %132 = vmatmul.f32.gmra.mxu0 %v111
  %v133 = vpop.f32.mrf.mxu0
  %v134 = vadd.f32 0.0, %v133
  %135 = vdwg.mxu0
  %v137 = vsel %vm48, %v22, 0
  %v140 = vsel %vm48, %v23, 0
  %142 = vmatpush.msra.mxu0 0.0
  %143 = vmatpush.msra.mxu0 0.0
  %144 = vmatpush.msra.mxu0 0.0
  %145 = vmatpush.msra.mxu0 0.0
  %146 = vmatpush.msra.mxu0 0.0
  %147 = vmatpush.msra.mxu0 0.0
  %148 = vmatpush.msra.mxu0 0.0
  %149 = vmatpush.msra.mxu0 0.0
  %150 = vmatpush.msra.mxu0 0.0
  %151 = vmatpush.msra.mxu0 0.0
  %152 = vmatpush.msra.mxu0 0.0
  %153 = vmatpush.msra.mxu0 0.0
  %154 = vmatpush.msra.mxu0 0.0
  %155 = vmatpush.msra.mxu0 0.0
  %156 = vmatpush.msra.mxu0 %v15
  %157 = vmatpush.msra.mxu0 %v14
  %158 = vmatmul.f32.gmra.mxu0 %v137
  %v159 = vpop.f32.mrf.mxu0
  %v160 = vadd.f32 0.0, %v159
  %161 = vmatmul.f32.gmra.mxu0 %v140
  %v162 = vpop.f32.mrf.mxu0
  %v163 = vadd.f32 0.0, %v162
  %164 = vdwg.mxu0
  %v166 = vsel %vm48, %v24, 0
  %v169 = vsel %vm48, %v25, 0
  %171 = vmatpush.msra.mxu0 0.0
  %172 = vmatpush.msra.mxu0 0.0
  %173 = vmatpush.msra.mxu0 0.0
  %174 = vmatpush.msra.mxu0 0.0
  %175 = vmatpush.msra.mxu0 0.0
  %176 = vmatpush.msra.mxu0 0.0
  %177 = vmatpush.msra.mxu0 0.0
  %178 = vmatpush.msra.mxu0 0.0
  %179 = vmatpush.msra.mxu0 0.0
  %180 = vmatpush.msra.mxu0 0.0
  %181 = vmatpush.msra.mxu0 0.0
  %182 = vmatpush.msra.mxu0 0.0
  %183 = vmatpush.msra.mxu0 0.0
  %184 = vmatpush.msra.mxu0 0.0
  %185 = vmatpush.msra.mxu0 %v15
  %186 = vmatpush.msra.mxu0 %v14
  %187 = vmatmul.f32.gmra.mxu0 %v166
  %v188 = vpop.f32.mrf.mxu0
  %v189 = vadd.f32 0.0, %v188
  %190 = vmatmul.f32.gmra.mxu0 %v169
  %v191 = vpop.f32.mrf.mxu0
  %v192 = vadd.f32 0.0, %v191
  %193 = vdwg.mxu0
  %v195 = vsel %vm48, %v26, 0
  %v198 = vsel %vm48, %v27, 0
  %200 = vmatpush.msra.mxu0 0.0
  %201 = vmatpush.msra.mxu0 0.0
  %202 = vmatpush.msra.mxu0 0.0
  %203 = vmatpush.msra.mxu0 0.0
  %204 = vmatpush.msra.mxu0 0.0
  %205 = vmatpush.msra.mxu0 0.0
  %206 = vmatpush.msra.mxu0 0.0
  %207 = vmatpush.msra.mxu0 0.0
  %208 = vmatpush.msra.mxu0 0.0
  %209 = vmatpush.msra.mxu0 0.0
  %210 = vmatpush.msra.mxu0 0.0
  %211 = vmatpush.msra.mxu0 0.0
  %212 = vmatpush.msra.mxu0 0.0
  %213 = vmatpush.msra.mxu0 0.0
  %214 = vmatpush.msra.mxu0 %v15
  %215 = vmatpush.msra.mxu0 %v14
  %216 = vmatmul.f32.gmra.mxu0 %v195
  %v217 = vpop.f32.mrf.mxu0
  %v218 = vadd.f32 0.0, %v217
  %219 = vmatmul.f32.gmra.mxu0 %v198
  %v220 = vpop.f32.mrf.mxu0
  %v221 = vadd.f32 0.0, %v220
  %222 = vdwg.mxu0
  %v224 = vsel %vm48, %v28, 0
  %v227 = vsel %vm48, %v29, 0
  %229 = vmatpush.msra.mxu0 0.0
  %230 = vmatpush.msra.mxu0 0.0
  %231 = vmatpush.msra.mxu0 0.0
  %232 = vmatpush.msra.mxu0 0.0
  %233 = vmatpush.msra.mxu0 0.0
  %234 = vmatpush.msra.mxu0 0.0
  %235 = vmatpush.msra.mxu0 0.0
  %236 = vmatpush.msra.mxu0 0.0
  %237 = vmatpush.msra.mxu0 0.0
  %238 = vmatpush.msra.mxu0 0.0
  %239 = vmatpush.msra.mxu0 0.0
  %240 = vmatpush.msra.mxu0 0.0
  %241 = vmatpush.msra.mxu0 0.0
  %242 = vmatpush.msra.mxu0 0.0
  %243 = vmatpush.msra.mxu0 %v15
  %244 = vmatpush.msra.mxu0 %v14
  %245 = vmatmul.f32.gmra.mxu0 %v224
  %v246 = vpop.f32.mrf.mxu0
  %v247 = vadd.f32 0.0, %v246
  %248 = vmatmul.f32.gmra.mxu0 %v227
  %v249 = vpop.f32.mrf.mxu0
  %v250 = vadd.f32 0.0, %v249
  %251 = vdwg.mxu0
  %v253 = vsel %vm48, %v30, 0
  %v256 = vsel %vm48, %v31, 0
  %258 = vmatpush.msra.mxu0 0.0
  %259 = vmatpush.msra.mxu0 0.0
  %260 = vmatpush.msra.mxu0 0.0
  %261 = vmatpush.msra.mxu0 0.0
  %262 = vmatpush.msra.mxu0 0.0
  %263 = vmatpush.msra.mxu0 0.0
  %264 = vmatpush.msra.mxu0 0.0
  %265 = vmatpush.msra.mxu0 0.0
  %266 = vmatpush.msra.mxu0 0.0
  %267 = vmatpush.msra.mxu0 0.0
  %268 = vmatpush.msra.mxu0 0.0
  %269 = vmatpush.msra.mxu0 0.0
  %270 = vmatpush.msra.mxu0 0.0
  %271 = vmatpush.msra.mxu0 0.0
  %272 = vmatpush.msra.mxu0 %v15
  %273 = vmatpush.msra.mxu0 %v14
  %274 = vmatmul.f32.gmra.mxu0 %v253
  %v275 = vpop.f32.mrf.mxu0
  %v276 = vadd.f32 0.0, %v275
  %277 = vmatmul.f32.gmra.mxu0 %v256
  %v278 = vpop.f32.mrf.mxu0
  %v279 = vadd.f32 0.0, %v278
  %280 = vdwg.mxu0
  %v282 = vsel %vm48, %v32, 0
  %v285 = vsel %vm48, %v33, 0
  %287 = vmatpush.msra.mxu0 0.0
  %288 = vmatpush.msra.mxu0 0.0
  %289 = vmatpush.msra.mxu0 0.0
  %290 = vmatpush.msra.mxu0 0.0
  %291 = vmatpush.msra.mxu0 0.0
  %292 = vmatpush.msra.mxu0 0.0
  %293 = vmatpush.msra.mxu0 0.0
  %294 = vmatpush.msra.mxu0 0.0
  %295 = vmatpush.msra.mxu0 0.0
  %296 = vmatpush.msra.mxu0 0.0
  %297 = vmatpush.msra.mxu0 0.0
  %298 = vmatpush.msra.mxu0 0.0
  %299 = vmatpush.msra.mxu0 0.0
  %300 = vmatpush.msra.mxu0 0.0
  %301 = vmatpush.msra.mxu0 %v15
  %302 = vmatpush.msra.mxu0 %v14
  %303 = vmatmul.f32.gmra.mxu0 %v282
  %v304 = vpop.f32.mrf.mxu0
  %v305 = vadd.f32 0.0, %v304
  %306 = vmatmul.f32.gmra.mxu0 %v285
  %v307 = vpop.f32.mrf.mxu0
  %v308 = vadd.f32 0.0, %v307
  %309 = vdwg.mxu0
  %v311 = vsel %vm48, %v34, 0
  %v314 = vsel %vm48, %v35, 0
  %316 = vmatpush.msra.mxu0 0.0
  %317 = vmatpush.msra.mxu0 0.0
  %318 = vmatpush.msra.mxu0 0.0
  %319 = vmatpush.msra.mxu0 0.0
  %320 = vmatpush.msra.mxu0 0.0
  %321 = vmatpush.msra.mxu0 0.0
  %322 = vmatpush.msra.mxu0 0.0
  %323 = vmatpush.msra.mxu0 0.0
  %324 = vmatpush.msra.mxu0 0.0
  %325 = vmatpush.msra.mxu0 0.0
  %326 = vmatpush.msra.mxu0 0.0
  %327 = vmatpush.msra.mxu0 0.0
  %328 = vmatpush.msra.mxu0 0.0
  %329 = vmatpush.msra.mxu0 0.0
  %330 = vmatpush.msra.mxu0 %v15
  %331 = vmatpush.msra.mxu0 %v14
  %332 = vmatmul.f32.gmra.mxu0 %v311
  %v333 = vpop.f32.mrf.mxu0
  %v334 = vadd.f32 0.0, %v333
  %335 = vmatmul.f32.gmra.mxu0 %v314
  %v336 = vpop.f32.mrf.mxu0
  %v337 = vadd.f32 0.0, %v336
  %338 = vdwg.mxu0
  %v340 = vsel %vm48, %v36, 0
  %v343 = vsel %vm48, %v37, 0
  %345 = vmatpush.msra.mxu0 0.0
  %346 = vmatpush.msra.mxu0 0.0
  %347 = vmatpush.msra.mxu0 0.0
  %348 = vmatpush.msra.mxu0 0.0
  %349 = vmatpush.msra.mxu0 0.0
  %350 = vmatpush.msra.mxu0 0.0
  %351 = vmatpush.msra.mxu0 0.0
  %352 = vmatpush.msra.mxu0 0.0
  %353 = vmatpush.msra.mxu0 0.0
  %354 = vmatpush.msra.mxu0 0.0
  %355 = vmatpush.msra.mxu0 0.0
  %356 = vmatpush.msra.mxu0 0.0
  %357 = vmatpush.msra.mxu0 0.0
  %358 = vmatpush.msra.mxu0 0.0
  %359 = vmatpush.msra.mxu0 %v15
  %360 = vmatpush.msra.mxu0 %v14
  %361 = vmatmul.f32.gmra.mxu0 %v340
  %v362 = vpop.f32.mrf.mxu0
  %v363 = vadd.f32 0.0, %v362
  %364 = vmatmul.f32.gmra.mxu0 %v343
  %v365 = vpop.f32.mrf.mxu0
  %v366 = vadd.f32 0.0, %v365
  %367 = vdwg.mxu0
  %v369 = vsel %vm48, %v38, 0
  %v372 = vsel %vm48, %v39, 0
  %374 = vmatpush.msra.mxu0 0.0
  %375 = vmatpush.msra.mxu0 0.0
  %376 = vmatpush.msra.mxu0 0.0
  %377 = vmatpush.msra.mxu0 0.0
  %378 = vmatpush.msra.mxu0 0.0
  %379 = vmatpush.msra.mxu0 0.0
  %380 = vmatpush.msra.mxu0 0.0
  %381 = vmatpush.msra.mxu0 0.0
  %382 = vmatpush.msra.mxu0 0.0
  %383 = vmatpush.msra.mxu0 0.0
  %384 = vmatpush.msra.mxu0 0.0
  %385 = vmatpush.msra.mxu0 0.0
  %386 = vmatpush.msra.mxu0 0.0
  %387 = vmatpush.msra.mxu0 0.0
  %388 = vmatpush.msra.mxu0 %v15
  %389 = vmatpush.msra.mxu0 %v14
  %390 = vmatmul.f32.gmra.mxu0 %v369
  %v391 = vpop.f32.mrf.mxu0
  %v392 = vadd.f32 0.0, %v391
  %393 = vmatmul.f32.gmra.mxu0 %v372
  %v394 = vpop.f32.mrf.mxu0
  %v395 = vadd.f32 0.0, %v394
  %396 = vdwg.mxu0
  %v398 = vsel %vm48, %v40, 0
  %v401 = vsel %vm48, %v41, 0
  %403 = vmatpush.msra.mxu0 0.0
  %404 = vmatpush.msra.mxu0 0.0
  %405 = vmatpush.msra.mxu0 0.0
  %406 = vmatpush.msra.mxu0 0.0
  %407 = vmatpush.msra.mxu0 0.0
  %408 = vmatpush.msra.mxu0 0.0
  %409 = vmatpush.msra.mxu0 0.0
  %410 = vmatpush.msra.mxu0 0.0
  %411 = vmatpush.msra.mxu0 0.0
  %412 = vmatpush.msra.mxu0 0.0
  %413 = vmatpush.msra.mxu0 0.0
  %414 = vmatpush.msra.mxu0 0.0
  %415 = vmatpush.msra.mxu0 0.0
  %416 = vmatpush.msra.mxu0 0.0
  %417 = vmatpush.msra.mxu0 %v15
  %418 = vmatpush.msra.mxu0 %v14
  %419 = vmatmul.f32.gmra.mxu0 %v398
  %v420 = vpop.f32.mrf.mxu0
  %v421 = vadd.f32 0.0, %v420
  %422 = vmatmul.f32.gmra.mxu0 %v401
  %v423 = vpop.f32.mrf.mxu0
  %v424 = vadd.f32 0.0, %v423
  %425 = vdwg.mxu0
  %v427 = vsel %vm48, %v42, 0
  %v430 = vsel %vm48, %v43, 0
  %432 = vmatpush.msra.mxu0 0.0
  %433 = vmatpush.msra.mxu0 0.0
  %434 = vmatpush.msra.mxu0 0.0
  %435 = vmatpush.msra.mxu0 0.0
  %436 = vmatpush.msra.mxu0 0.0
  %437 = vmatpush.msra.mxu0 0.0
  %438 = vmatpush.msra.mxu0 0.0
  %439 = vmatpush.msra.mxu0 0.0
  %440 = vmatpush.msra.mxu0 0.0
  %441 = vmatpush.msra.mxu0 0.0
  %442 = vmatpush.msra.mxu0 0.0
  %443 = vmatpush.msra.mxu0 0.0
  %444 = vmatpush.msra.mxu0 0.0
  %445 = vmatpush.msra.mxu0 0.0
  %446 = vmatpush.msra.mxu0 %v15
  %447 = vmatpush.msra.mxu0 %v14
  %448 = vmatmul.f32.gmra.mxu0 %v427
  %v449 = vpop.f32.mrf.mxu0
  %v450 = vadd.f32 0.0, %v449
  %451 = vmatmul.f32.gmra.mxu0 %v430
  %v452 = vpop.f32.mrf.mxu0
  %v453 = vadd.f32 0.0, %v452
  %454 = vdwg.mxu0
  %v456 = vsel %vm48, %v44, 0
  %v459 = vsel %vm48, %v45, 0
  %461 = vmatpush.msra.mxu0 0.0
  %462 = vmatpush.msra.mxu0 0.0
  %463 = vmatpush.msra.mxu0 0.0
  %464 = vmatpush.msra.mxu0 0.0
  %465 = vmatpush.msra.mxu0 0.0
  %466 = vmatpush.msra.mxu0 0.0
  %467 = vmatpush.msra.mxu0 0.0
  %468 = vmatpush.msra.mxu0 0.0
  %469 = vmatpush.msra.mxu0 0.0
  %470 = vmatpush.msra.mxu0 0.0
  %471 = vmatpush.msra.mxu0 0.0
  %472 = vmatpush.msra.mxu0 0.0
  %473 = vmatpush.msra.mxu0 0.0
  %474 = vmatpush.msra.mxu0 0.0
  %475 = vmatpush.msra.mxu0 %v15
  %476 = vmatpush.msra.mxu0 %v14
  %477 = vmatmul.f32.gmra.mxu0 %v456
  %v478 = vpop.f32.mrf.mxu0
  %v479 = vadd.f32 0.0, %v478
  %480 = vmatmul.f32.gmra.mxu0 %v459
  %v481 = vpop.f32.mrf.mxu0
  %v482 = vadd.f32 0.0, %v481
  %483 = vdwg.mxu0
  %v485 = vsel %vm48, %v46, 0
  %v488 = vsel %vm48, %v47, 0
  %490 = vmatpush.msra.mxu0 0.0
  %491 = vmatpush.msra.mxu0 0.0
  %492 = vmatpush.msra.mxu0 0.0
  %493 = vmatpush.msra.mxu0 0.0
  %494 = vmatpush.msra.mxu0 0.0
  %495 = vmatpush.msra.mxu0 0.0
  %496 = vmatpush.msra.mxu0 0.0
  %497 = vmatpush.msra.mxu0 0.0
  %498 = vmatpush.msra.mxu0 0.0
  %499 = vmatpush.msra.mxu0 0.0
  %500 = vmatpush.msra.mxu0 0.0
  %501 = vmatpush.msra.mxu0 0.0
  %502 = vmatpush.msra.mxu0 0.0
  %503 = vmatpush.msra.mxu0 0.0
  %504 = vmatpush.msra.mxu0 %v15
  %505 = vmatpush.msra.mxu0 %v14
  %506 = vmatmul.f32.gmra.mxu0 %v485
  %v507 = vpop.f32.mrf.mxu0
  %v508 = vadd.f32 0.0, %v507
  %509 = vmatmul.f32.gmra.mxu0 %v488
  %v510 = vpop.f32.mrf.mxu0
  %v511 = vadd.f32 0.0, %v510
  %512 = vdwg.mxu0
  %v513 = vld [vmem:[%s1] sm:$0xff]
  %v514 = vld [vmem:[%s1 + $0x8] sm:$0xff]
  %v515 = vld [vmem:[%s1 + $0x10] sm:$0xff]
  %v516 = vld [vmem:[%s1 + $0x18] sm:$0xff]
  %v517 = vld [vmem:[%s1 + $0x20] sm:$0xff]
  %v518 = vld [vmem:[%s1 + $0x28] sm:$0xff]
  %v519 = vld [vmem:[%s1 + $0x30] sm:$0xff]
  %v520 = vld [vmem:[%s1 + $0x38] sm:$0xff]
  %v521 = vld [vmem:[%s1 + $0x40] sm:$0xff]
  %v522 = vld [vmem:[%s1 + $0x48] sm:$0xff]
  %v523 = vld [vmem:[%s1 + $0x50] sm:$0xff]
  %v524 = vld [vmem:[%s1 + $0x58] sm:$0xff]
  %v525 = vld [vmem:[%s1 + $0x60] sm:$0xff]
  %v526 = vld [vmem:[%s1 + $0x68] sm:$0xff]
  %v527 = vld [vmem:[%s1 + $0x70] sm:$0xff]
  %v528 = vld [vmem:[%s1 + $0x78] sm:$0xff]
  %v529 = vld [vmem:[%s1 + $0x80] sm:$0xff]
  %v530 = vld [vmem:[%s1 + $0x88] sm:$0xff]
  %v531 = vld [vmem:[%s1 + $0x90] sm:$0xff]
  %v532 = vld [vmem:[%s1 + $0x98] sm:$0xff]
  %v533 = vld [vmem:[%s1 + $0xa0] sm:$0xff]
  %v534 = vld [vmem:[%s1 + $0xa8] sm:$0xff]
  %v535 = vld [vmem:[%s1 + $0xb0] sm:$0xff]
  %v536 = vld [vmem:[%s1 + $0xb8] sm:$0xff]
  %v537 = vld [vmem:[%s1 + $0xc0] sm:$0xff]
  %v538 = vld [vmem:[%s1 + $0xc8] sm:$0xff]
  %v539 = vld [vmem:[%s1 + $0xd0] sm:$0xff]
  %v540 = vld [vmem:[%s1 + $0xd8] sm:$0xff]
  %v541 = vld [vmem:[%s1 + $0xe0] sm:$0xff]
  %v542 = vld [vmem:[%s1 + $0xe8] sm:$0xff]
  %v543 = vld [vmem:[%s1 + $0xf0] sm:$0xff]
  %v544 = vld [vmem:[%s1 + $0xf8] sm:$0xff]
  %v546 = vsel %vm48, %v513, 0
  %v549 = vsel %vm48, %v514, 0
  %551 = vmatpush.msra.mxu0 0.0
  %552 = vmatpush.msra.mxu0 0.0
  %553 = vmatpush.msra.mxu0 0.0
  %554 = vmatpush.msra.mxu0 0.0
  %555 = vmatpush.msra.mxu0 0.0
  %556 = vmatpush.msra.mxu0 0.0
  %557 = vmatpush.msra.mxu0 0.0
  %558 = vmatpush.msra.mxu0 0.0
  %559 = vmatpush.msra.mxu0 0.0
  %560 = vmatpush.msra.mxu0 0.0
  %561 = vmatpush.msra.mxu0 0.0
  %562 = vmatpush.msra.mxu0 0.0
  %563 = vmatpush.msra.mxu0 0.0
  %564 = vmatpush.msra.mxu0 0.0
  %565 = vmatpush.msra.mxu0 %v76
  %566 = vmatpush.msra.mxu0 %v73
  %567 = vmatmul.f32.gmra.mxu0 %v546
  %v568 = vpop.f32.mrf.mxu0
  %v569 = vadd.f32 0.0, %v568
  %570 = vmatmul.f32.gmra.mxu0 %v549
  %v571 = vpop.f32.mrf.mxu0
  %v572 = vadd.f32 0.0, %v571
  %573 = vdwg.mxu0
  %v575 = vsel %vm48, %v515, 0
  %v578 = vsel %vm48, %v516, 0
  %580 = vmatpush.msra.mxu0 0.0
  %581 = vmatpush.msra.mxu0 0.0
  %582 = vmatpush.msra.mxu0 0.0
  %583 = vmatpush.msra.mxu0 0.0
  %584 = vmatpush.msra.mxu0 0.0
  %585 = vmatpush.msra.mxu0 0.0
  %586 = vmatpush.msra.mxu0 0.0
  %587 = vmatpush.msra.mxu0 0.0
  %588 = vmatpush.msra.mxu0 0.0
  %589 = vmatpush.msra.mxu0 0.0
  %590 = vmatpush.msra.mxu0 0.0
  %591 = vmatpush.msra.mxu0 0.0
  %592 = vmatpush.msra.mxu0 0.0
  %593 = vmatpush.msra.mxu0 0.0
  %594 = vmatpush.msra.mxu0 %v105
  %595 = vmatpush.msra.mxu0 %v102
  %596 = vmatmul.f32.gmra.mxu0 %v575
  %v597 = vpop.f32.mrf.mxu0
  %v598 = vadd.f32 0.0, %v597
  %599 = vmatmul.f32.gmra.mxu0 %v578
  %v600 = vpop.f32.mrf.mxu0
  %v601 = vadd.f32 0.0, %v600
  %602 = vdwg.mxu0
  %v604 = vsel %vm48, %v517, 0
  %v607 = vsel %vm48, %v518, 0
  %609 = vmatpush.msra.mxu0 0.0
  %610 = vmatpush.msra.mxu0 0.0
  %611 = vmatpush.msra.mxu0 0.0
  %612 = vmatpush.msra.mxu0 0.0
  %613 = vmatpush.msra.mxu0 0.0
  %614 = vmatpush.msra.mxu0 0.0
  %615 = vmatpush.msra.mxu0 0.0
  %616 = vmatpush.msra.mxu0 0.0
  %617 = vmatpush.msra.mxu0 0.0
  %618 = vmatpush.msra.mxu0 0.0
  %619 = vmatpush.msra.mxu0 0.0
  %620 = vmatpush.msra.mxu0 0.0
  %621 = vmatpush.msra.mxu0 0.0
  %622 = vmatpush.msra.mxu0 0.0
  %623 = vmatpush.msra.mxu0 %v134
  %624 = vmatpush.msra.mxu0 %v131
  %625 = vmatmul.f32.gmra.mxu0 %v604
  %v626 = vpop.f32.mrf.mxu0
  %v627 = vadd.f32 0.0, %v626
  %628 = vmatmul.f32.gmra.mxu0 %v607
  %v629 = vpop.f32.mrf.mxu0
  %v630 = vadd.f32 0.0, %v629
  %631 = vdwg.mxu0
  %v633 = vsel %vm48, %v519, 0
  %v636 = vsel %vm48, %v520, 0
  %638 = vmatpush.msra.mxu0 0.0
  %639 = vmatpush.msra.mxu0 0.0
  %640 = vmatpush.msra.mxu0 0.0
  %641 = vmatpush.msra.mxu0 0.0
  %642 = vmatpush.msra.mxu0 0.0
  %643 = vmatpush.msra.mxu0 0.0
  %644 = vmatpush.msra.mxu0 0.0
  %645 = vmatpush.msra.mxu0 0.0
  %646 = vmatpush.msra.mxu0 0.0
  %647 = vmatpush.msra.mxu0 0.0
  %648 = vmatpush.msra.mxu0 0.0
  %649 = vmatpush.msra.mxu0 0.0
  %650 = vmatpush.msra.mxu0 0.0
  %651 = vmatpush.msra.mxu0 0.0
  %652 = vmatpush.msra.mxu0 %v163
  %653 = vmatpush.msra.mxu0 %v160
  %654 = vmatmul.f32.gmra.mxu0 %v633
  %v655 = vpop.f32.mrf.mxu0
  %v656 = vadd.f32 0.0, %v655
  %657 = vmatmul.f32.gmra.mxu0 %v636
  %v658 = vpop.f32.mrf.mxu0
  %v659 = vadd.f32 0.0, %v658
  %660 = vdwg.mxu0
  %v662 = vsel %vm48, %v521, 0
  %v665 = vsel %vm48, %v522, 0
  %667 = vmatpush.msra.mxu0 0.0
  %668 = vmatpush.msra.mxu0 0.0
  %669 = vmatpush.msra.mxu0 0.0
  %670 = vmatpush.msra.mxu0 0.0
  %671 = vmatpush.msra.mxu0 0.0
  %672 = vmatpush.msra.mxu0 0.0
  %673 = vmatpush.msra.mxu0 0.0
  %674 = vmatpush.msra.mxu0 0.0
  %675 = vmatpush.msra.mxu0 0.0
  %676 = vmatpush.msra.mxu0 0.0
  %677 = vmatpush.msra.mxu0 0.0
  %678 = vmatpush.msra.mxu0 0.0
  %679 = vmatpush.msra.mxu0 0.0
  %680 = vmatpush.msra.mxu0 0.0
  %681 = vmatpush.msra.mxu0 %v192
  %682 = vmatpush.msra.mxu0 %v189
  %683 = vmatmul.f32.gmra.mxu0 %v662
  %v684 = vpop.f32.mrf.mxu0
  %v685 = vadd.f32 0.0, %v684
  %686 = vmatmul.f32.gmra.mxu0 %v665
  %v687 = vpop.f32.mrf.mxu0
  %v688 = vadd.f32 0.0, %v687
  %689 = vdwg.mxu0
  %v691 = vsel %vm48, %v523, 0
  %v694 = vsel %vm48, %v524, 0
  %696 = vmatpush.msra.mxu0 0.0
  %697 = vmatpush.msra.mxu0 0.0
  %698 = vmatpush.msra.mxu0 0.0
  %699 = vmatpush.msra.mxu0 0.0
  %700 = vmatpush.msra.mxu0 0.0
  %701 = vmatpush.msra.mxu0 0.0
  %702 = vmatpush.msra.mxu0 0.0
  %703 = vmatpush.msra.mxu0 0.0
  %704 = vmatpush.msra.mxu0 0.0
  %705 = vmatpush.msra.mxu0 0.0
  %706 = vmatpush.msra.mxu0 0.0
  %707 = vmatpush.msra.mxu0 0.0
  %708 = vmatpush.msra.mxu0 0.0
  %709 = vmatpush.msra.mxu0 0.0
  %710 = vmatpush.msra.mxu0 %v221
  %711 = vmatpush.msra.mxu0 %v218
  %712 = vmatmul.f32.gmra.mxu0 %v691
  %v713 = vpop.f32.mrf.mxu0
  %v714 = vadd.f32 0.0, %v713
  %715 = vmatmul.f32.gmra.mxu0 %v694
  %v716 = vpop.f32.mrf.mxu0
  %v717 = vadd.f32 0.0, %v716
  %718 = vdwg.mxu0
  %v720 = vsel %vm48, %v525, 0
  %v723 = vsel %vm48, %v526, 0
  %725 = vmatpush.msra.mxu0 0.0
  %726 = vmatpush.msra.mxu0 0.0
  %727 = vmatpush.msra.mxu0 0.0
  %728 = vmatpush.msra.mxu0 0.0
  %729 = vmatpush.msra.mxu0 0.0
  %730 = vmatpush.msra.mxu0 0.0
  %731 = vmatpush.msra.mxu0 0.0
  %732 = vmatpush.msra.mxu0 0.0
  %733 = vmatpush.msra.mxu0 0.0
  %734 = vmatpush.msra.mxu0 0.0
  %735 = vmatpush.msra.mxu0 0.0
  %736 = vmatpush.msra.mxu0 0.0
  %737 = vmatpush.msra.mxu0 0.0
  %738 = vmatpush.msra.mxu0 0.0
  %739 = vmatpush.msra.mxu0 %v250
  %740 = vmatpush.msra.mxu0 %v247
  %741 = vmatmul.f32.gmra.mxu0 %v720
  %v742 = vpop.f32.mrf.mxu0
  %v743 = vadd.f32 0.0, %v742
  %744 = vmatmul.f32.gmra.mxu0 %v723
  %v745 = vpop.f32.mrf.mxu0
  %v746 = vadd.f32 0.0, %v745
  %747 = vdwg.mxu0
  %v749 = vsel %vm48, %v527, 0
  %v752 = vsel %vm48, %v528, 0
  %754 = vmatpush.msra.mxu0 0.0
  %755 = vmatpush.msra.mxu0 0.0
  %756 = vmatpush.msra.mxu0 0.0
  %757 = vmatpush.msra.mxu0 0.0
  %758 = vmatpush.msra.mxu0 0.0
  %759 = vmatpush.msra.mxu0 0.0
  %760 = vmatpush.msra.mxu0 0.0
  %761 = vmatpush.msra.mxu0 0.0
  %762 = vmatpush.msra.mxu0 0.0
  %763 = vmatpush.msra.mxu0 0.0
  %764 = vmatpush.msra.mxu0 0.0
  %765 = vmatpush.msra.mxu0 0.0
  %766 = vmatpush.msra.mxu0 0.0
  %767 = vmatpush.msra.mxu0 0.0
  %768 = vmatpush.msra.mxu0 %v279
  %769 = vmatpush.msra.mxu0 %v276
  %770 = vmatmul.f32.gmra.mxu0 %v749
  %v771 = vpop.f32.mrf.mxu0
  %v772 = vadd.f32 0.0, %v771
  %773 = vmatmul.f32.gmra.mxu0 %v752
  %v774 = vpop.f32.mrf.mxu0
  %v775 = vadd.f32 0.0, %v774
  %776 = vdwg.mxu0
  %v778 = vsel %vm48, %v529, 0
  %v781 = vsel %vm48, %v530, 0
  %783 = vmatpush.msra.mxu0 0.0
  %784 = vmatpush.msra.mxu0 0.0
  %785 = vmatpush.msra.mxu0 0.0
  %786 = vmatpush.msra.mxu0 0.0
  %787 = vmatpush.msra.mxu0 0.0
  %788 = vmatpush.msra.mxu0 0.0
  %789 = vmatpush.msra.mxu0 0.0
  %790 = vmatpush.msra.mxu0 0.0
  %791 = vmatpush.msra.mxu0 0.0
  %792 = vmatpush.msra.mxu0 0.0
  %793 = vmatpush.msra.mxu0 0.0
  %794 = vmatpush.msra.mxu0 0.0
  %795 = vmatpush.msra.mxu0 0.0
  %796 = vmatpush.msra.mxu0 0.0
  %797 = vmatpush.msra.mxu0 %v308
  %798 = vmatpush.msra.mxu0 %v305
  %799 = vmatmul.f32.gmra.mxu0 %v778
  %v800 = vpop.f32.mrf.mxu0
  %v801 = vadd.f32 0.0, %v800
  %802 = vmatmul.f32.gmra.mxu0 %v781
  %v803 = vpop.f32.mrf.mxu0
  %v804 = vadd.f32 0.0, %v803
  %805 = vdwg.mxu0
  %v807 = vsel %vm48, %v531, 0
  %v810 = vsel %vm48, %v532, 0
  %812 = vmatpush.msra.mxu0 0.0
  %813 = vmatpush.msra.mxu0 0.0
  %814 = vmatpush.msra.mxu0 0.0
  %815 = vmatpush.msra.mxu0 0.0
  %816 = vmatpush.msra.mxu0 0.0
  %817 = vmatpush.msra.mxu0 0.0
  %818 = vmatpush.msra.mxu0 0.0
  %819 = vmatpush.msra.mxu0 0.0
  %820 = vmatpush.msra.mxu0 0.0
  %821 = vmatpush.msra.mxu0 0.0
  %822 = vmatpush.msra.mxu0 0.0
  %823 = vmatpush.msra.mxu0 0.0
  %824 = vmatpush.msra.mxu0 0.0
  %825 = vmatpush.msra.mxu0 0.0
  %826 = vmatpush.msra.mxu0 %v337
  %827 = vmatpush.msra.mxu0 %v334
  %828 = vmatmul.f32.gmra.mxu0 %v807
  %v829 = vpop.f32.mrf.mxu0
  %v830 = vadd.f32 0.0, %v829
  %831 = vmatmul.f32.gmra.mxu0 %v810
  %v832 = vpop.f32.mrf.mxu0
  %v833 = vadd.f32 0.0, %v832
  %834 = vdwg.mxu0
  %v836 = vsel %vm48, %v533, 0
  %v839 = vsel %vm48, %v534, 0
  %841 = vmatpush.msra.mxu0 0.0
  %842 = vmatpush.msra.mxu0 0.0
  %843 = vmatpush.msra.mxu0 0.0
  %844 = vmatpush.msra.mxu0 0.0
  %845 = vmatpush.msra.mxu0 0.0
  %846 = vmatpush.msra.mxu0 0.0
  %847 = vmatpush.msra.mxu0 0.0
  %848 = vmatpush.msra.mxu0 0.0
  %849 = vmatpush.msra.mxu0 0.0
  %850 = vmatpush.msra.mxu0 0.0
  %851 = vmatpush.msra.mxu0 0.0
  %852 = vmatpush.msra.mxu0 0.0
  %853 = vmatpush.msra.mxu0 0.0
  %854 = vmatpush.msra.mxu0 0.0
  %855 = vmatpush.msra.mxu0 %v366
  %856 = vmatpush.msra.mxu0 %v363
  %857 = vmatmul.f32.gmra.mxu0 %v836
  %v858 = vpop.f32.mrf.mxu0
  %v859 = vadd.f32 0.0, %v858
  %860 = vmatmul.f32.gmra.mxu0 %v839
  %v861 = vpop.f32.mrf.mxu0
  %v862 = vadd.f32 0.0, %v861
  %863 = vdwg.mxu0
  %v865 = vsel %vm48, %v535, 0
  %v868 = vsel %vm48, %v536, 0
  %870 = vmatpush.msra.mxu0 0.0
  %871 = vmatpush.msra.mxu0 0.0
  %872 = vmatpush.msra.mxu0 0.0
  %873 = vmatpush.msra.mxu0 0.0
  %874 = vmatpush.msra.mxu0 0.0
  %875 = vmatpush.msra.mxu0 0.0
  %876 = vmatpush.msra.mxu0 0.0
  %877 = vmatpush.msra.mxu0 0.0
  %878 = vmatpush.msra.mxu0 0.0
  %879 = vmatpush.msra.mxu0 0.0
  %880 = vmatpush.msra.mxu0 0.0
  %881 = vmatpush.msra.mxu0 0.0
  %882 = vmatpush.msra.mxu0 0.0
  %883 = vmatpush.msra.mxu0 0.0
  %884 = vmatpush.msra.mxu0 %v395
  %885 = vmatpush.msra.mxu0 %v392
  %886 = vmatmul.f32.gmra.mxu0 %v865
  %v887 = vpop.f32.mrf.mxu0
  %v888 = vadd.f32 0.0, %v887
  %889 = vmatmul.f32.gmra.mxu0 %v868
  %v890 = vpop.f32.mrf.mxu0
  %v891 = vadd.f32 0.0, %v890
  %892 = vdwg.mxu0
  %v894 = vsel %vm48, %v537, 0
  %v897 = vsel %vm48, %v538, 0
  %899 = vmatpush.msra.mxu0 0.0
  %900 = vmatpush.msra.mxu0 0.0
  %901 = vmatpush.msra.mxu0 0.0
  %902 = vmatpush.msra.mxu0 0.0
  %903 = vmatpush.msra.mxu0 0.0
  %904 = vmatpush.msra.mxu0 0.0
  %905 = vmatpush.msra.mxu0 0.0
  %906 = vmatpush.msra.mxu0 0.0
  %907 = vmatpush.msra.mxu0 0.0
  %908 = vmatpush.msra.mxu0 0.0
  %909 = vmatpush.msra.mxu0 0.0
  %910 = vmatpush.msra.mxu0 0.0
  %911 = vmatpush.msra.mxu0 0.0
  %912 = vmatpush.msra.mxu0 0.0
  %913 = vmatpush.msra.mxu0 %v424
  %914 = vmatpush.msra.mxu0 %v421
  %915 = vmatmul.f32.gmra.mxu0 %v894
  %v916 = vpop.f32.mrf.mxu0
  %v917 = vadd.f32 0.0, %v916
  %918 = vmatmul.f32.gmra.mxu0 %v897
  %v919 = vpop.f32.mrf.mxu0
  %v920 = vadd.f32 0.0, %v919
  %921 = vdwg.mxu0
  %v923 = vsel %vm48, %v539, 0
  %v926 = vsel %vm48, %v540, 0
  %928 = vmatpush.msra.mxu0 0.0
  %929 = vmatpush.msra.mxu0 0.0
  %930 = vmatpush.msra.mxu0 0.0
  %931 = vmatpush.msra.mxu0 0.0
  %932 = vmatpush.msra.mxu0 0.0
  %933 = vmatpush.msra.mxu0 0.0
  %934 = vmatpush.msra.mxu0 0.0
  %935 = vmatpush.msra.mxu0 0.0
  %936 = vmatpush.msra.mxu0 0.0
  %937 = vmatpush.msra.mxu0 0.0
  %938 = vmatpush.msra.mxu0 0.0
  %939 = vmatpush.msra.mxu0 0.0
  %940 = vmatpush.msra.mxu0 0.0
  %941 = vmatpush.msra.mxu0 0.0
  %942 = vmatpush.msra.mxu0 %v453
  %943 = vmatpush.msra.mxu0 %v450
  %944 = vmatmul.f32.gmra.mxu0 %v923
  %v945 = vpop.f32.mrf.mxu0
  %v946 = vadd.f32 0.0, %v945
  %947 = vmatmul.f32.gmra.mxu0 %v926
  %v948 = vpop.f32.mrf.mxu0
  %v949 = vadd.f32 0.0, %v948
  %950 = vdwg.mxu0
  %v952 = vsel %vm48, %v541, 0
  %v955 = vsel %vm48, %v542, 0
  %957 = vmatpush.msra.mxu0 0.0
  %958 = vmatpush.msra.mxu0 0.0
  %959 = vmatpush.msra.mxu0 0.0
  %960 = vmatpush.msra.mxu0 0.0
  %961 = vmatpush.msra.mxu0 0.0
  %962 = vmatpush.msra.mxu0 0.0
  %963 = vmatpush.msra.mxu0 0.0
  %964 = vmatpush.msra.mxu0 0.0
  %965 = vmatpush.msra.mxu0 0.0
  %966 = vmatpush.msra.mxu0 0.0
  %967 = vmatpush.msra.mxu0 0.0
  %968 = vmatpush.msra.mxu0 0.0
  %969 = vmatpush.msra.mxu0 0.0
  %970 = vmatpush.msra.mxu0 0.0
  %971 = vmatpush.msra.mxu0 %v482
  %972 = vmatpush.msra.mxu0 %v479
  %973 = vmatmul.f32.gmra.mxu0 %v952
  %v974 = vpop.f32.mrf.mxu0
  %v975 = vadd.f32 0.0, %v974
  %976 = vmatmul.f32.gmra.mxu0 %v955
  %v977 = vpop.f32.mrf.mxu0
  %v978 = vadd.f32 0.0, %v977
  %979 = vdwg.mxu0
  %v981 = vsel %vm48, %v543, 0
  %v984 = vsel %vm48, %v544, 0
  %986 = vmatpush.msra.mxu0 0.0
  %987 = vmatpush.msra.mxu0 0.0
  %988 = vmatpush.msra.mxu0 0.0
  %989 = vmatpush.msra.mxu0 0.0
  %990 = vmatpush.msra.mxu0 0.0
  %991 = vmatpush.msra.mxu0 0.0
  %992 = vmatpush.msra.mxu0 0.0
  %993 = vmatpush.msra.mxu0 0.0
  %994 = vmatpush.msra.mxu0 0.0
  %995 = vmatpush.msra.mxu0 0.0
  %996 = vmatpush.msra.mxu0 0.0
  %997 = vmatpush.msra.mxu0 0.0
  %998 = vmatpush.msra.mxu0 0.0
  %999 = vmatpush.msra.mxu0 0.0
  %1000 = vmatpush.msra.mxu0 %v511
  %1001 = vmatpush.msra.mxu0 %v508
  %1002 = vmatmul.f32.gmra.mxu0 %v981
  %v1003 = vpop.f32.mrf.mxu0
  %v1004 = vadd.f32 0.0, %v1003
  %1005 = vmatmul.f32.gmra.mxu0 %v984
  %v1006 = vpop.f32.mrf.mxu0
  %v1007 = vadd.f32 0.0, %v1006
  %1008 = vdwg.mxu0
  %v1009 = vadd.f32 %v73, %v569
  %v1010 = vadd.f32 %v76, %v572
  %v1011 = vadd.f32 %v102, %v598
  %v1012 = vadd.f32 %v105, %v601
  %v1013 = vadd.f32 %v131, %v627
  %v1014 = vadd.f32 %v134, %v630
  %v1015 = vadd.f32 %v160, %v656
  %v1016 = vadd.f32 %v163, %v659
  %v1017 = vadd.f32 %v189, %v685
  %v1018 = vadd.f32 %v192, %v688
  %v1019 = vadd.f32 %v218, %v714
  %v1020 = vadd.f32 %v221, %v717
  %v1021 = vadd.f32 %v247, %v743
  %v1022 = vadd.f32 %v250, %v746
  %v1023 = vadd.f32 %v276, %v772
  %v1024 = vadd.f32 %v279, %v775
  %v1025 = vadd.f32 %v305, %v801
  %v1026 = vadd.f32 %v308, %v804
  %v1027 = vadd.f32 %v334, %v830
  %v1028 = vadd.f32 %v337, %v833
  %v1029 = vadd.f32 %v363, %v859
  %v1030 = vadd.f32 %v366, %v862
  %v1031 = vadd.f32 %v392, %v888
  %v1032 = vadd.f32 %v395, %v891
  %v1033 = vadd.f32 %v421, %v917
  %v1034 = vadd.f32 %v424, %v920
  %v1035 = vadd.f32 %v450, %v946
  %v1036 = vadd.f32 %v453, %v949
  %v1037 = vadd.f32 %v479, %v975
  %v1038 = vadd.f32 %v482, %v978
  %v1039 = vadd.f32 %v508, %v1004
  %v1040 = vadd.f32 %v511, %v1007
  %1041 = vst.msk [vmem:[%s3] sm:$0xff] %vm48, %v1009
  %1042 = vst.msk [vmem:[%s3 + $0x8] sm:$0xff] %vm48, %v1010
  %1043 = vst.msk [vmem:[%s3 + $0x10] sm:$0xff] %vm48, %v1011
  %1044 = vst.msk [vmem:[%s3 + $0x18] sm:$0xff] %vm48, %v1012
  %1045 = vst.msk [vmem:[%s3 + $0x20] sm:$0xff] %vm48, %v1013
  %1046 = vst.msk [vmem:[%s3 + $0x28] sm:$0xff] %vm48, %v1014
  %1047 = vst.msk [vmem:[%s3 + $0x30] sm:$0xff] %vm48, %v1015
  %1048 = vst.msk [vmem:[%s3 + $0x38] sm:$0xff] %vm48, %v1016
  %1049 = vst.msk [vmem:[%s3 + $0x40] sm:$0xff] %vm48, %v1017
  %1050 = vst.msk [vmem:[%s3 + $0x48] sm:$0xff] %vm48, %v1018
  %1051 = vst.msk [vmem:[%s3 + $0x50] sm:$0xff] %vm48, %v1019
  %1052 = vst.msk [vmem:[%s3 + $0x58] sm:$0xff] %vm48, %v1020
  %1053 = vst.msk [vmem:[%s3 + $0x60] sm:$0xff] %vm48, %v1021
  %1054 = vst.msk [vmem:[%s3 + $0x68] sm:$0xff] %vm48, %v1022
  %1055 = vst.msk [vmem:[%s3 + $0x70] sm:$0xff] %vm48, %v1023
  %1056 = vst.msk [vmem:[%s3 + $0x78] sm:$0xff] %vm48, %v1024
  %1057 = vst.msk [vmem:[%s3 + $0x80] sm:$0xff] %vm48, %v1025
  %1058 = vst.msk [vmem:[%s3 + $0x88] sm:$0xff] %vm48, %v1026
  %1059 = vst.msk [vmem:[%s3 + $0x90] sm:$0xff] %vm48, %v1027
  %1060 = vst.msk [vmem:[%s3 + $0x98] sm:$0xff] %vm48, %v1028
  %1061 = vst.msk [vmem:[%s3 + $0xa0] sm:$0xff] %vm48, %v1029
  %1062 = vst.msk [vmem:[%s3 + $0xa8] sm:$0xff] %vm48, %v1030
  %1063 = vst.msk [vmem:[%s3 + $0xb0] sm:$0xff] %vm48, %v1031
  %1064 = vst.msk [vmem:[%s3 + $0xb8] sm:$0xff] %vm48, %v1032
  %1065 = vst.msk [vmem:[%s3 + $0xc0] sm:$0xff] %vm48, %v1033
  %1066 = vst.msk [vmem:[%s3 + $0xc8] sm:$0xff] %vm48, %v1034
  %1067 = vst.msk [vmem:[%s3 + $0xd0] sm:$0xff] %vm48, %v1035
  %1068 = vst.msk [vmem:[%s3 + $0xd8] sm:$0xff] %vm48, %v1036
  %1069 = vst.msk [vmem:[%s3 + $0xe0] sm:$0xff] %vm48, %v1037
  %1070 = vst.msk [vmem:[%s3 + $0xe8] sm:$0xff] %vm48, %v1038
  %1071 = vst.msk [vmem:[%s3 + $0xf0] sm:$0xff] %vm48, %v1039
  %1072 = vst.msk [vmem:[%s3 + $0xf8] sm:$0xff] %vm48, %v1040
  // Predicated region
  $region14: #{run.3} parent=0 // pred_check
    _
  $region15: #{run.3} parent=0 // pred_check_branch
    %1074 = sbr.rel (0) target = $region17
  $region16: #{run.3} parent=0 // pred_region
    _
  $region17: #{run.3} parent=0 // pred_fallthru
    _
  // Predicated region
  $region18: #{run.3} parent=0 // pred_check
    _
  $region19: #{run.3} parent=0 // pred_check_branch
    %1076 = sbr.rel (0) target = $region21
  $region20: #{run.3} parent=0 // pred_region
    _
  $region21: #{run.3} parent=0 // pred_fallthru
    _

// kernel: run.2
$region0: #{run.2}
  #allocation0 [shape = 'u32[]', space=smem, size = 0x4, offset = 0x4, fixed_abs, tag = 'smem constant byte address 0x4 - core index']
  #allocation1 [shape = 'u32[72,128]{1,0:T(1,128)}', space=vmem, size = 0x9000, scoped, tag = 'internal scratch']
  %s0 = inlined_call_operand.vmem [shape: f32[144,512], index: 0, kind: input, shape index: {}]
  %s1 = inlined_call_operand.vmem [shape: f32[8,512], index: 1, kind: input, shape index: {}]
  %s2 = inlined_call_operand.vmem [shape: f32[8,144], index: 2, kind: input, shape index: {}]
  %s3 = inlined_call_operand.vmem [shape: f32[8,1], index: 3, kind: input, shape index: {}]
  %s4 = inlined_call_operand.vmem [shape: f32[304,8], index: 4, kind: input, shape index: {}]
  %s5 = inlined_call_operand.vmem [shape: f32[304,1], index: 5, kind: input, shape index: {}]
  %s6 = inlined_call_operand.vmem [shape: f32[8,8], index: 6, kind: input, shape index: {}]
  %s7 = inlined_call_operand.vmem [shape: f32[8,1024], index: 7, kind: output, shape index: {}]
  %s8 = sld [smem:[#allocation0]]
  $region38: #{run.2} parent=0
    _
  %s10 = ssub.s32 1, %s8
  %s11 = scalar_select 0, %s10, %s8
  // Predicated region
  $region2: #{run.2} parent=0 // pred_check
    _
  $region3: #{run.2} parent=0 // pred_check_branch
    %13 = sbr.rel (0) target = $region5
  $region4: #{run.2} parent=0 // pred_region
    _
  $region5: #{run.2} parent=0 // pred_fallthru
    _
  // Predicated region
  $region6: #{run.2} parent=0 // pred_check
    _
  $region7: #{run.2} parent=0 // pred_check_branch
    %15 = sbr.rel (0) target = $region9
  $region8: #{run.2} parent=0 // pred_region
    _
  $region9: #{run.2} parent=0 // pred_fallthru
    _
  // Predicated region
  $region10: #{run.2} parent=0 // pred_check
    _
  $region11: #{run.2} parent=0 // pred_check_branch
    %17 = sbr.rel (0) target = $region13
  $region12: #{run.2} parent=0 // pred_region
    _
  $region13: #{run.2} parent=0 // pred_fallthru
    _
  // Predicated region
  $region14: #{run.2} parent=0 // pred_check
    _
  $region15: #{run.2} parent=0 // pred_check_branch
    %19 = sbr.rel (0) target = $region17
  $region16: #{run.2} parent=0 // pred_region
    _
  $region17: #{run.2} parent=0 // pred_fallthru
    _
  // Predicated region
  $region18: #{run.2} parent=0 // pred_check
    _
  $region19: #{run.2} parent=0 // pred_check_branch
    %21 = sbr.rel (0) target = $region21
  $region20: #{run.2} parent=0 // pred_region
    _
  $region21: #{run.2} parent=0 // pred_fallthru
    _
  // Predicated region
  $region22: #{run.2} parent=0 // pred_check
    _
  $region23: #{run.2} parent=0 // pred_check_branch
    %23 = sbr.rel (0) target = $region25
  $region24: #{run.2} parent=0 // pred_region
    _
  $region25: #{run.2} parent=0 // pred_fallthru
    _
  // Predicated region
  $region26: #{run.2} parent=0 // pred_check
    _
  $region27: #{run.2} parent=0 // pred_check_branch
    %25 = sbr.rel (0) target = $region29
  $region28: #{run.2} parent=0 // pred_region
    _
  $region29: #{run.2} parent=0 // pred_fallthru
    _
  %v26 = vld [vmem:[%s2] sm:$0xff]
  %v27 = vld [vmem:[%s2 + $0x8] sm:$0xff]
  %v28 = vld [vmem:[%s0] sm:$0xff]
  %v29 = vld [vmem:[%s0 + $0x8] sm:$0xff]
  %v30 = vld [vmem:[%s0 + $0x10] sm:$0xff]
  %v31 = vld [vmem:[%s0 + $0x18] sm:$0xff]
  %v32 = vld [vmem:[%s0 + $0x20] sm:$0xff]
  %v33 = vld [vmem:[%s0 + $0x28] sm:$0xff]
  %v34 = vld [vmem:[%s0 + $0x30] sm:$0xff]
  %v35 = vld [vmem:[%s0 + $0x38] sm:$0xff]
  %v36 = vld [vmem:[%s0 + $0x40] sm:$0xff]
  %v37 = vld [vmem:[%s0 + $0x48] sm:$0xff]
  %v38 = vld [vmem:[%s0 + $0x50] sm:$0xff]
  %v39 = vld [vmem:[%s0 + $0x58] sm:$0xff]
  %v40 = vld [vmem:[%s0 + $0x60] sm:$0xff]
  %v41 = vld [vmem:[%s0 + $0x68] sm:$0xff]
  %v42 = vld [vmem:[%s0 + $0x70] sm:$0xff]
  %v43 = vld [vmem:[%s0 + $0x78] sm:$0xff]
  %v44 = vld [vmem:[%s0 + $0x80] sm:$0xff]
  %v45 = vld [vmem:[%s0 + $0x88] sm:$0xff]
  %v46 = vld [vmem:[%s0 + $0x90] sm:$0xff]
  %v47 = vld [vmem:[%s0 + $0x98] sm:$0xff]
  %v48 = vld [vmem:[%s0 + $0xa0] sm:$0xff]
  %v49 = vld [vmem:[%s0 + $0xa8] sm:$0xff]
  %v50 = vld [vmem:[%s0 + $0xb0] sm:$0xff]
  %v51 = vld [vmem:[%s0 + $0xb8] sm:$0xff]
  %v52 = vld [vmem:[%s0 + $0xc0] sm:$0xff]
  %v53 = vld [vmem:[%s0 + $0xc8] sm:$0xff]
  %v54 = vld [vmem:[%s0 + $0xd0] sm:$0xff]
  %v55 = vld [vmem:[%s0 + $0xd8] sm:$0xff]
  %v56 = vld [vmem:[%s0 + $0xe0] sm:$0xff]
  %v57 = vld [vmem:[%s0 + $0xe8] sm:$0xff]
  %v58 = vld [vmem:[%s0 + $0xf0] sm:$0xff]
  %v59 = vld [vmem:[%s0 + $0xf8] sm:$0xff]
  %v60 = vld [vmem:[%s0 + $0x100] sm:$0xff]
  %v61 = vld [vmem:[%s0 + $0x108] sm:$0xff]
  %v62 = vld [vmem:[%s0 + $0x110] sm:$0xff]
  %v63 = vld [vmem:[%s0 + $0x118] sm:$0xff]
  %v64 = vld [vmem:[%s0 + $0x120] sm:$0xff]
  %v65 = vld [vmem:[%s0 + $0x128] sm:$0xff]
  %v66 = vld [vmem:[%s0 + $0x130] sm:$0xff]
  %v67 = vld [vmem:[%s0 + $0x138] sm:$0xff]
  %v68 = vld [vmem:[%s0 + $0x140] sm:$0xff]
  %v69 = vld [vmem:[%s0 + $0x148] sm:$0xff]
  %v70 = vld [vmem:[%s0 + $0x150] sm:$0xff]
  %v71 = vld [vmem:[%s0 + $0x158] sm:$0xff]
  %v72 = vld [vmem:[%s0 + $0x160] sm:$0xff]
  %v73 = vld [vmem:[%s0 + $0x168] sm:$0xff]
  %v74 = vld [vmem:[%s0 + $0x170] sm:$0xff]
  %v75 = vld [vmem:[%s0 + $0x178] sm:$0xff]
  %v76 = vld [vmem:[%s0 + $0x180] sm:$0xff]
  %v77 = vld [vmem:[%s0 + $0x188] sm:$0xff]
  %v78 = vld [vmem:[%s0 + $0x190] sm:$0xff]
  %v79 = vld [vmem:[%s0 + $0x198] sm:$0xff]
  %v80 = vld [vmem:[%s0 + $0x1a0] sm:$0xff]
  %v81 = vld [vmem:[%s0 + $0x1a8] sm:$0xff]
  %v82 = vld [vmem:[%s0 + $0x1b0] sm:$0xff]
  %v83 = vld [vmem:[%s0 + $0x1b8] sm:$0xff]
  %v84 = vld [vmem:[%s0 + $0x1c0] sm:$0xff]
  %v85 = vld [vmem:[%s0 + $0x1c8] sm:$0xff]
  %v86 = vld [vmem:[%s0 + $0x1d0] sm:$0xff]
  %v87 = vld [vmem:[%s0 + $0x1d8] sm:$0xff]
  %v88 = vld [vmem:[%s0 + $0x1e0] sm:$0xff]
  %v89 = vld [vmem:[%s0 + $0x1e8] sm:$0xff]
  %v90 = vld [vmem:[%s0 + $0x1f0] sm:$0xff]
  %v91 = vld [vmem:[%s0 + $0x1f8] sm:$0xff]
  %v92 = vld [vmem:[%s0 + $0x200] sm:$0xff]
  %v93 = vld [vmem:[%s0 + $0x208] sm:$0xff]
  %v94 = vld [vmem:[%s0 + $0x210] sm:$0xff]
  %v95 = vld [vmem:[%s0 + $0x218] sm:$0xff]
  %v96 = vld [vmem:[%s0 + $0x220] sm:$0xff]
  %v97 = vld [vmem:[%s0 + $0x228] sm:$0xff]
  %v98 = vld [vmem:[%s0 + $0x230] sm:$0xff]
  %v99 = vld [vmem:[%s0 + $0x238] sm:$0xff]
  %v100 = vld [vmem:[%s3] sm:$0xff]
  %102 = vset.pattern.permute.xlu0 0
  %103 = vperm.xlu0 %102, %v100
  %v104 = vpop.permute.xlu0 %103
  %vm106 = vcmask 130048
  %v108 = vsel %vm106, %v27, 0
  %110 = vmatpush.msra.mxu0 %v88
  %111 = vmatpush.msra.mxu0 %v84
  %112 = vmatpush.msra.mxu0 %v80
  %113 = vmatpush.msra.mxu0 %v76
  %114 = vmatpush.msra.mxu0 %v72
  %115 = vmatpush.msra.mxu0 %v68
  %116 = vmatpush.msra.mxu0 %v64
  %117 = vmatpush.msra.mxu0 %v60
  %118 = vmatpush.msra.mxu0 %v56
  %119 = vmatpush.msra.mxu0 %v52
  %120 = vmatpush.msra.mxu0 %v48
  %121 = vmatpush.msra.mxu0 %v44
  %122 = vmatpush.msra.mxu0 %v40
  %123 = vmatpush.msra.mxu0 %v36
  %124 = vmatpush.msra.mxu0 %v32
  %125 = vmatpush.msra.mxu0 %v28
  %126 = vmatmul.f32.gmra.mxu0 %v26
  %v127 = vpop.f32.mrf.mxu0
  %v128 = vadd.f32 %v104, %v127
  %129 = vdwg.mxu0
  %130 = vmatpush.msra.mxu0 0.0
  %131 = vmatpush.msra.mxu0 0.0
  %132 = vmatpush.msra.mxu0 0.0
  %133 = vmatpush.msra.mxu0 0.0
  %134 = vmatpush.msra.mxu0 0.0
  %135 = vmatpush.msra.mxu0 0.0
  %136 = vmatpush.msra.mxu0 0.0
  %137 = vmatpush.msra.mxu0 0.0
  %138 = vmatpush.msra.mxu0 0.0
  %139 = vmatpush.msra.mxu0 0.0
  %140 = vmatpush.msra.mxu0 0.0
  %141 = vmatpush.msra.mxu0 0.0
  %142 = vmatpush.msra.mxu0 0.0
  %143 = vmatpush.msra.mxu0 0.0
  %144 = vmatpush.msra.mxu0 %v96
  %145 = vmatpush.msra.mxu0 %v92
  %146 = vmatmul.f32.gmra.mxu0 %v108
  %v147 = vpop.f32.mrf.mxu0
  %v148 = vadd.f32 %v128, %v147
  %149 = vdwg.mxu0
  %150 = vmatpush.msra.mxu0 %v89
  %151 = vmatpush.msra.mxu0 %v85
  %152 = vmatpush.msra.mxu0 %v81
  %153 = vmatpush.msra.mxu0 %v77
  %154 = vmatpush.msra.mxu0 %v73
  %155 = vmatpush.msra.mxu0 %v69
  %156 = vmatpush.msra.mxu0 %v65
  %157 = vmatpush.msra.mxu0 %v61
  %158 = vmatpush.msra.mxu0 %v57
  %159 = vmatpush.msra.mxu0 %v53
  %160 = vmatpush.msra.mxu0 %v49
  %161 = vmatpush.msra.mxu0 %v45
  %162 = vmatpush.msra.mxu0 %v41
  %163 = vmatpush.msra.mxu0 %v37
  %164 = vmatpush.msra.mxu0 %v33
  %165 = vmatpush.msra.mxu0 %v29
  %166 = vmatmul.f32.gmra.mxu0 %v26
  %v167 = vpop.f32.mrf.mxu0
  %v168 = vadd.f32 %v104, %v167
  %169 = vdwg.mxu0
  %170 = vmatpush.msra.mxu0 0.0
  %171 = vmatpush.msra.mxu0 0.0
  %172 = vmatpush.msra.mxu0 0.0
  %173 = vmatpush.msra.mxu0 0.0
  %174 = vmatpush.msra.mxu0 0.0
  %175 = vmatpush.msra.mxu0 0.0
  %176 = vmatpush.msra.mxu0 0.0
  %177 = vmatpush.msra.mxu0 0.0
  %178 = vmatpush.msra.mxu0 0.0
  %179 = vmatpush.msra.mxu0 0.0
  %180 = vmatpush.msra.mxu0 0.0
  %181 = vmatpush.msra.mxu0 0.0
  %182 = vmatpush.msra.mxu0 0.0
  %183 = vmatpush.msra.mxu0 0.0
  %184 = vmatpush.msra.mxu0 %v97
  %185 = vmatpush.msra.mxu0 %v93
  %186 = vmatmul.f32.gmra.mxu0 %v108
  %v187 = vpop.f32.mrf.mxu0
  %v188 = vadd.f32 %v168, %v187
  %189 = vdwg.mxu0
  %190 = vmatpush.msra.mxu0 %v90
  %191 = vmatpush.msra.mxu0 %v86
  %192 = vmatpush.msra.mxu0 %v82
  %193 = vmatpush.msra.mxu0 %v78
  %194 = vmatpush.msra.mxu0 %v74
  %195 = vmatpush.msra.mxu0 %v70
  %196 = vmatpush.msra.mxu0 %v66
  %197 = vmatpush.msra.mxu0 %v62
  %198 = vmatpush.msra.mxu0 %v58
  %199 = vmatpush.msra.mxu0 %v54
  %200 = vmatpush.msra.mxu0 %v50
  %201 = vmatpush.msra.mxu0 %v46
  %202 = vmatpush.msra.mxu0 %v42
  %203 = vmatpush.msra.mxu0 %v38
  %204 = vmatpush.msra.mxu0 %v34
  %205 = vmatpush.msra.mxu0 %v30
  %206 = vmatmul.f32.gmra.mxu0 %v26
  %v207 = vpop.f32.mrf.mxu0
  %v208 = vadd.f32 %v104, %v207
  %209 = vdwg.mxu0
  %210 = vmatpush.msra.mxu0 0.0
  %211 = vmatpush.msra.mxu0 0.0
  %212 = vmatpush.msra.mxu0 0.0
  %213 = vmatpush.msra.mxu0 0.0
  %214 = vmatpush.msra.mxu0 0.0
  %215 = vmatpush.msra.mxu0 0.0
  %216 = vmatpush.msra.mxu0 0.0
  %217 = vmatpush.msra.mxu0 0.0
  %218 = vmatpush.msra.mxu0 0.0
  %219 = vmatpush.msra.mxu0 0.0
  %220 = vmatpush.msra.mxu0 0.0
  %221 = vmatpush.msra.mxu0 0.0
  %222 = vmatpush.msra.mxu0 0.0
  %223 = vmatpush.msra.mxu0 0.0
  %224 = vmatpush.msra.mxu0 %v98
  %225 = vmatpush.msra.mxu0 %v94
  %226 = vmatmul.f32.gmra.mxu0 %v108
  %v227 = vpop.f32.mrf.mxu0
  %v228 = vadd.f32 %v208, %v227
  %229 = vdwg.mxu0
  %230 = vmatpush.msra.mxu0 %v91
  %231 = vmatpush.msra.mxu0 %v87
  %232 = vmatpush.msra.mxu0 %v83
  %233 = vmatpush.msra.mxu0 %v79
  %234 = vmatpush.msra.mxu0 %v75
  %235 = vmatpush.msra.mxu0 %v71
  %236 = vmatpush.msra.mxu0 %v67
  %237 = vmatpush.msra.mxu0 %v63
  %238 = vmatpush.msra.mxu0 %v59
  %239 = vmatpush.msra.mxu0 %v55
  %240 = vmatpush.msra.mxu0 %v51
  %241 = vmatpush.msra.mxu0 %v47
  %242 = vmatpush.msra.mxu0 %v43
  %243 = vmatpush.msra.mxu0 %v39
  %244 = vmatpush.msra.mxu0 %v35
  %245 = vmatpush.msra.mxu0 %v31
  %246 = vmatmul.f32.gmra.mxu0 %v26
  %v247 = vpop.f32.mrf.mxu0
  %v248 = vadd.f32 %v104, %v247
  %249 = vdwg.mxu0
  %250 = vmatpush.msra.mxu0 0.0
  %251 = vmatpush.msra.mxu0 0.0
  %252 = vmatpush.msra.mxu0 0.0
  %253 = vmatpush.msra.mxu0 0.0
  %254 = vmatpush.msra.mxu0 0.0
  %255 = vmatpush.msra.mxu0 0.0
  %256 = vmatpush.msra.mxu0 0.0
  %257 = vmatpush.msra.mxu0 0.0
  %258 = vmatpush.msra.mxu0 0.0
  %259 = vmatpush.msra.mxu0 0.0
  %260 = vmatpush.msra.mxu0 0.0
  %261 = vmatpush.msra.mxu0 0.0
  %262 = vmatpush.msra.mxu0 0.0
  %263 = vmatpush.msra.mxu0 0.0
  %264 = vmatpush.msra.mxu0 %v99
  %265 = vmatpush.msra.mxu0 %v95
  %266 = vmatmul.f32.gmra.mxu0 %v108
  %v267 = vpop.f32.mrf.mxu0
  %v268 = vadd.f32 %v248, %v267
  %269 = vdwg.mxu0
  %v270 = vmax.f32 %v148, 0.0
  %v271 = vmax.f32 %v188, 0.0
  %v272 = vmax.f32 %v228, 0.0
  %v273 = vmax.f32 %v268, 0.0
  %v274 = vld [vmem:[%s4] sm:$0xff]
  %v275 = vld [vmem:[%s4 + $0x8] sm:$0xff]
  %v276 = vld [vmem:[%s4 + $0x10] sm:$0xff]
  %v277 = vld [vmem:[%s4 + $0x18] sm:$0xff]
  %v278 = vld [vmem:[%s4 + $0x20] sm:$0xff]
  %v279 = vld [vmem:[%s4 + $0x28] sm:$0xff]
  %v280 = vld [vmem:[%s4 + $0x30] sm:$0xff]
  %v281 = vld [vmem:[%s4 + $0x38] sm:$0xff]
  %v282 = vld [vmem:[%s4 + $0x40] sm:$0xff]
  %v283 = vld [vmem:[%s4 + $0x48] sm:$0xff]
  %v284 = vld [vmem:[%s4 + $0x50] sm:$0xff]
  %v285 = vld [vmem:[%s4 + $0x58] sm:$0xff]
  %v286 = vld [vmem:[%s4 + $0x60] sm:$0xff]
  %v287 = vld [vmem:[%s4 + $0x68] sm:$0xff]
  %v288 = vld [vmem:[%s4 + $0x70] sm:$0xff]
  %v289 = vld [vmem:[%s4 + $0x78] sm:$0xff]
  %v290 = vld [vmem:[%s4 + $0x80] sm:$0xff]
  %v291 = vld [vmem:[%s4 + $0x88] sm:$0xff]
  %v292 = vld [vmem:[%s4 + $0x90] sm:$0xff]
  %v293 = vld [vmem:[%s4 + $0x98] sm:$0xff]
  %v294 = vld [vmem:[%s4 + $0xa0] sm:$0xff]
  %v295 = vld [vmem:[%s4 + $0xa8] sm:$0xff]
  %v296 = vld [vmem:[%s4 + $0xb0] sm:$0xff]
  %v297 = vld [vmem:[%s4 + $0xb8] sm:$0xff]
  %v298 = vld [vmem:[%s4 + $0xc0] sm:$0xff]
  %v299 = vld [vmem:[%s4 + $0xc8] sm:$0xff]
  %v300 = vld [vmem:[%s4 + $0xd0] sm:$0xff]
  %v301 = vld [vmem:[%s4 + $0xd8] sm:$0xff]
  %v302 = vld [vmem:[%s4 + $0xe0] sm:$0xff]
  %v303 = vld [vmem:[%s4 + $0xe8] sm:$0xff]
  %v304 = vld [vmem:[%s4 + $0xf0] sm:$0xff]
  %v305 = vld [vmem:[%s4 + $0xf8] sm:$0xff]
  %v306 = vld [vmem:[%s4 + $0x100] sm:$0xff]
  %v307 = vld [vmem:[%s4 + $0x108] sm:$0xff]
  %v308 = vld [vmem:[%s4 + $0x110] sm:$0xff]
  %v309 = vld [vmem:[%s4 + $0x118] sm:$0xff]
  %v310 = vld [vmem:[%s4 + $0x120] sm:$0xff]
  %v311 = vld [vmem:[%s4 + $0x128] sm:$0xff]
  %v312 = vld [vmem:[%s5] sm:$0xff]
  %v313 = vld [vmem:[%s5 + $0x8] sm:$0xff]
  %v314 = vld [vmem:[%s5 + $0x10] sm:$0xff]
  %v315 = vld [vmem:[%s5 + $0x18] sm:$0xff]
  %v316 = vld [vmem:[%s5 + $0x20] sm:$0xff]
  %v317 = vld [vmem:[%s5 + $0x28] sm:$0xff]
  %v318 = vld [vmem:[%s5 + $0x30] sm:$0xff]
  %v319 = vld [vmem:[%s5 + $0x38] sm:$0xff]
  %v320 = vld [vmem:[%s5 + $0x40] sm:$0xff]
  %v321 = vld [vmem:[%s5 + $0x48] sm:$0xff]
  %v322 = vld [vmem:[%s5 + $0x50] sm:$0xff]
  %v323 = vld [vmem:[%s5 + $0x58] sm:$0xff]
  %v324 = vld [vmem:[%s5 + $0x60] sm:$0xff]
  %v325 = vld [vmem:[%s5 + $0x68] sm:$0xff]
  %v326 = vld [vmem:[%s5 + $0x70] sm:$0xff]
  %v327 = vld [vmem:[%s5 + $0x78] sm:$0xff]
  %v328 = vld [vmem:[%s5 + $0x80] sm:$0xff]
  %v329 = vld [vmem:[%s5 + $0x88] sm:$0xff]
  %v330 = vld [vmem:[%s5 + $0x90] sm:$0xff]
  %v331 = vld [vmem:[%s5 + $0x98] sm:$0xff]
  %v332 = vld [vmem:[%s5 + $0xa0] sm:$0xff]
  %v333 = vld [vmem:[%s5 + $0xa8] sm:$0xff]
  %v334 = vld [vmem:[%s5 + $0xb0] sm:$0xff]
  %v335 = vld [vmem:[%s5 + $0xb8] sm:$0xff]
  %v336 = vld [vmem:[%s5 + $0xc0] sm:$0xff]
  %v337 = vld [vmem:[%s5 + $0xc8] sm:$0xff]
  %v338 = vld [vmem:[%s5 + $0xd0] sm:$0xff]
  %v339 = vld [vmem:[%s5 + $0xd8] sm:$0xff]
  %v340 = vld [vmem:[%s5 + $0xe0] sm:$0xff]
  %v341 = vld [vmem:[%s5 + $0xe8] sm:$0xff]
  %v342 = vld [vmem:[%s5 + $0xf0] sm:$0xff]
  %v343 = vld [vmem:[%s5 + $0xf8] sm:$0xff]
  %v344 = vld [vmem:[%s5 + $0x100] sm:$0xff]
  %v345 = vld [vmem:[%s5 + $0x108] sm:$0xff]
  %v346 = vld [vmem:[%s5 + $0x110] sm:$0xff]
  %v347 = vld [vmem:[%s5 + $0x118] sm:$0xff]
  %v348 = vld [vmem:[%s5 + $0x120] sm:$0xff]
  %v349 = vld [vmem:[%s5 + $0x128] sm:$0xff]
  %351 = vset.pattern.permute.xlu0 0
  %352 = vperm.xlu0 %351, %v312
  %v353 = vpop.permute.xlu0 %352
  %356 = vset.pattern.permute.xlu0 0
  %357 = vperm.xlu0 %356, %v313
  %v358 = vpop.permute.xlu0 %357
  %361 = vset.pattern.permute.xlu0 0
  %362 = vperm.xlu0 %361, %v314
  %v363 = vpop.permute.xlu0 %362
  %366 = vset.pattern.permute.xlu0 0
  %367 = vperm.xlu0 %366, %v315
  %v368 = vpop.permute.xlu0 %367
  %371 = vset.pattern.permute.xlu0 0
  %372 = vperm.xlu0 %371, %v316
  %v373 = vpop.permute.xlu0 %372
  %376 = vset.pattern.permute.xlu0 0
  %377 = vperm.xlu0 %376, %v317
  %v378 = vpop.permute.xlu0 %377
  %381 = vset.pattern.permute.xlu0 0
  %382 = vperm.xlu0 %381, %v318
  %v383 = vpop.permute.xlu0 %382
  %386 = vset.pattern.permute.xlu0 0
  %387 = vperm.xlu0 %386, %v319
  %v388 = vpop.permute.xlu0 %387
  %391 = vset.pattern.permute.xlu0 0
  %392 = vperm.xlu0 %391, %v320
  %v393 = vpop.permute.xlu0 %392
  %396 = vset.pattern.permute.xlu0 0
  %397 = vperm.xlu0 %396, %v321
  %v398 = vpop.permute.xlu0 %397
  %401 = vset.pattern.permute.xlu0 0
  %402 = vperm.xlu0 %401, %v322
  %v403 = vpop.permute.xlu0 %402
  %406 = vset.pattern.permute.xlu0 0
  %407 = vperm.xlu0 %406, %v323
  %v408 = vpop.permute.xlu0 %407
  %411 = vset.pattern.permute.xlu0 0
  %412 = vperm.xlu0 %411, %v324
  %v413 = vpop.permute.xlu0 %412
  %416 = vset.pattern.permute.xlu0 0
  %417 = vperm.xlu0 %416, %v325
  %v418 = vpop.permute.xlu0 %417
  %421 = vset.pattern.permute.xlu0 0
  %422 = vperm.xlu0 %421, %v326
  %v423 = vpop.permute.xlu0 %422
  %426 = vset.pattern.permute.xlu0 0
  %427 = vperm.xlu0 %426, %v327
  %v428 = vpop.permute.xlu0 %427
  %431 = vset.pattern.permute.xlu0 0
  %432 = vperm.xlu0 %431, %v328
  %v433 = vpop.permute.xlu0 %432
  %436 = vset.pattern.permute.xlu0 0
  %437 = vperm.xlu0 %436, %v329
  %v438 = vpop.permute.xlu0 %437
  %441 = vset.pattern.permute.xlu0 0
  %442 = vperm.xlu0 %441, %v330
  %v443 = vpop.permute.xlu0 %442
  %446 = vset.pattern.permute.xlu0 0
  %447 = vperm.xlu0 %446, %v331
  %v448 = vpop.permute.xlu0 %447
  %451 = vset.pattern.permute.xlu0 0
  %452 = vperm.xlu0 %451, %v332
  %v453 = vpop.permute.xlu0 %452
  %456 = vset.pattern.permute.xlu0 0
  %457 = vperm.xlu0 %456, %v333
  %v458 = vpop.permute.xlu0 %457
  %461 = vset.pattern.permute.xlu0 0
  %462 = vperm.xlu0 %461, %v334
  %v463 = vpop.permute.xlu0 %462
  %466 = vset.pattern.permute.xlu0 0
  %467 = vperm.xlu0 %466, %v335
  %v468 = vpop.permute.xlu0 %467
  %471 = vset.pattern.permute.xlu0 0
  %472 = vperm.xlu0 %471, %v336
  %v473 = vpop.permute.xlu0 %472
  %476 = vset.pattern.permute.xlu0 0
  %477 = vperm.xlu0 %476, %v337
  %v478 = vpop.permute.xlu0 %477
  %481 = vset.pattern.permute.xlu0 0
  %482 = vperm.xlu0 %481, %v338
  %v483 = vpop.permute.xlu0 %482
  %486 = vset.pattern.permute.xlu0 0
  %487 = vperm.xlu0 %486, %v339
  %v488 = vpop.permute.xlu0 %487
  %491 = vset.pattern.permute.xlu0 0
  %492 = vperm.xlu0 %491, %v340
  %v493 = vpop.permute.xlu0 %492
  %496 = vset.pattern.permute.xlu0 0
  %497 = vperm.xlu0 %496, %v341
  %v498 = vpop.permute.xlu0 %497
  %501 = vset.pattern.permute.xlu0 0
  %502 = vperm.xlu0 %501, %v342
  %v503 = vpop.permute.xlu0 %502
  %506 = vset.pattern.permute.xlu0 0
  %507 = vperm.xlu0 %506, %v343
  %v508 = vpop.permute.xlu0 %507
  %511 = vset.pattern.permute.xlu0 0
  %512 = vperm.xlu0 %511, %v344
  %v513 = vpop.permute.xlu0 %512
  %516 = vset.pattern.permute.xlu0 0
  %517 = vperm.xlu0 %516, %v345
  %v518 = vpop.permute.xlu0 %517
  %521 = vset.pattern.permute.xlu0 0
  %522 = vperm.xlu0 %521, %v346
  %v523 = vpop.permute.xlu0 %522
  %526 = vset.pattern.permute.xlu0 0
  %527 = vperm.xlu0 %526, %v347
  %v528 = vpop.permute.xlu0 %527
  %531 = vset.pattern.permute.xlu0 0
  %532 = vperm.xlu0 %531, %v348
  %v533 = vpop.permute.xlu0 %532
  %536 = vset.pattern.permute.xlu0 0
  %537 = vperm.xlu0 %536, %v349
  %v538 = vpop.permute.xlu0 %537
  %vm540 = vcmask 64512
  %v542 = vsel %vm540, %v274, 0
  %v545 = vsel %vm540, %v275, 0
  %v548 = vsel %vm540, %v276, 0
  %v551 = vsel %vm540, %v277, 0
  %v554 = vsel %vm540, %v278, 0
  %v557 = vsel %vm540, %v279, 0
  %v560 = vsel %vm540, %v280, 0
  %v563 = vsel %vm540, %v281, 0
  %v566 = vsel %vm540, %v282, 0
  %v569 = vsel %vm540, %v283, 0
  %v572 = vsel %vm540, %v284, 0
  %v575 = vsel %vm540, %v285, 0
  %v578 = vsel %vm540, %v286, 0
  %v581 = vsel %vm540, %v287, 0
  %v584 = vsel %vm540, %v288, 0
  %v587 = vsel %vm540, %v289, 0
  %v590 = vsel %vm540, %v290, 0
  %v593 = vsel %vm540, %v291, 0
  %v596 = vsel %vm540, %v292, 0
  %v599 = vsel %vm540, %v293, 0
  %v602 = vsel %vm540, %v294, 0
  %v605 = vsel %vm540, %v295, 0
  %v608 = vsel %vm540, %v296, 0
  %v611 = vsel %vm540, %v297, 0
  %v614 = vsel %vm540, %v298, 0
  %v617 = vsel %vm540, %v299, 0
  %v620 = vsel %vm540, %v300, 0
  %v623 = vsel %vm540, %v301, 0
  %v626 = vsel %vm540, %v302, 0
  %v629 = vsel %vm540, %v303, 0
  %v632 = vsel %vm540, %v304, 0
  %v635 = vsel %vm540, %v305, 0
  %v638 = vsel %vm540, %v306, 0
  %v641 = vsel %vm540, %v307, 0
  %v644 = vsel %vm540, %v308, 0
  %v647 = vsel %vm540, %v309, 0
  %v650 = vsel %vm540, %v310, 0
  %v653 = vsel %vm540, %v311, 0
  %655 = vmatpush.msra.mxu0 0.0
  %656 = vmatpush.msra.mxu0 0.0
  %657 = vmatpush.msra.mxu0 0.0
  %658 = vmatpush.msra.mxu0 0.0
  %659 = vmatpush.msra.mxu0 0.0
  %660 = vmatpush.msra.mxu0 0.0
  %661 = vmatpush.msra.mxu0 0.0
  %662 = vmatpush.msra.mxu0 0.0
  %663 = vmatpush.msra.mxu0 0.0
  %664 = vmatpush.msra.mxu0 0.0
  %665 = vmatpush.msra.mxu0 0.0
  %666 = vmatpush.msra.mxu0 0.0
  %667 = vmatpush.msra.mxu0 0.0
  %668 = vmatpush.msra.mxu0 0.0
  %669 = vmatpush.msra.mxu0 0.0
  %670 = vmatpush.msra.mxu0 %v270
  %671 = vmatmul.f32.gmra.mxu0 %v542
  %v672 = vpop.f32.mrf.mxu0
  %v673 = vadd.f32 %v353, %v672
  %674 = vmatmul.f32.gmra.mxu0 %v545
  %v675 = vpop.f32.mrf.mxu0
  %v676 = vadd.f32 %v358, %v675
  %677 = vmatmul.f32.gmra.mxu0 %v548
  %v678 = vpop.f32.mrf.mxu0
  %v679 = vadd.f32 %v363, %v678
  %680 = vmatmul.f32.gmra.mxu0 %v551
  %v681 = vpop.f32.mrf.mxu0
  %v682 = vadd.f32 %v368, %v681
  %683 = vmatmul.f32.gmra.mxu0 %v554
  %v684 = vpop.f32.mrf.mxu0
  %v685 = vadd.f32 %v373, %v684
  %686 = vmatmul.f32.gmra.mxu0 %v557
  %v687 = vpop.f32.mrf.mxu0
  %v688 = vadd.f32 %v378, %v687
  %689 = vmatmul.f32.gmra.mxu0 %v560
  %v690 = vpop.f32.mrf.mxu0
  %v691 = vadd.f32 %v383, %v690
  %692 = vmatmul.f32.gmra.mxu0 %v563
  %v693 = vpop.f32.mrf.mxu0
  %v694 = vadd.f32 %v388, %v693
  %695 = vmatmul.f32.gmra.mxu0 %v566
  %v696 = vpop.f32.mrf.mxu0
  %v697 = vadd.f32 %v393, %v696
  %698 = vmatmul.f32.gmra.mxu0 %v569
  %v699 = vpop.f32.mrf.mxu0
  %v700 = vadd.f32 %v398, %v699
  %701 = vmatmul.f32.gmra.mxu0 %v572
  %v702 = vpop.f32.mrf.mxu0
  %v703 = vadd.f32 %v403, %v702
  %704 = vmatmul.f32.gmra.mxu0 %v575
  %v705 = vpop.f32.mrf.mxu0
  %v706 = vadd.f32 %v408, %v705
  %707 = vmatmul.f32.gmra.mxu0 %v578
  %v708 = vpop.f32.mrf.mxu0
  %v709 = vadd.f32 %v413, %v708
  %710 = vmatmul.f32.gmra.mxu0 %v581
  %v711 = vpop.f32.mrf.mxu0
  %v712 = vadd.f32 %v418, %v711
  %713 = vmatmul.f32.gmra.mxu0 %v584
  %v714 = vpop.f32.mrf.mxu0
  %v715 = vadd.f32 %v423, %v714
  %716 = vmatmul.f32.gmra.mxu0 %v587
  %v717 = vpop.f32.mrf.mxu0
  %v718 = vadd.f32 %v428, %v717
  %719 = vmatmul.f32.gmra.mxu0 %v590
  %v720 = vpop.f32.mrf.mxu0
  %v721 = vadd.f32 %v433, %v720
  %722 = vmatmul.f32.gmra.mxu0 %v593
  %v723 = vpop.f32.mrf.mxu0
  %v724 = vadd.f32 %v438, %v723
  %725 = vmatmul.f32.gmra.mxu0 %v596
  %v726 = vpop.f32.mrf.mxu0
  %v727 = vadd.f32 %v443, %v726
  %728 = vmatmul.f32.gmra.mxu0 %v599
  %v729 = vpop.f32.mrf.mxu0
  %v730 = vadd.f32 %v448, %v729
  %731 = vmatmul.f32.gmra.mxu0 %v602
  %v732 = vpop.f32.mrf.mxu0
  %v733 = vadd.f32 %v453, %v732
  %734 = vmatmul.f32.gmra.mxu0 %v605
  %v735 = vpop.f32.mrf.mxu0
  %v736 = vadd.f32 %v458, %v735
  %737 = vmatmul.f32.gmra.mxu0 %v608
  %v738 = vpop.f32.mrf.mxu0
  %v739 = vadd.f32 %v463, %v738
  %740 = vmatmul.f32.gmra.mxu0 %v611
  %v741 = vpop.f32.mrf.mxu0
  %v742 = vadd.f32 %v468, %v741
  %743 = vmatmul.f32.gmra.mxu0 %v614
  %v744 = vpop.f32.mrf.mxu0
  %v745 = vadd.f32 %v473, %v744
  %746 = vmatmul.f32.gmra.mxu0 %v617
  %v747 = vpop.f32.mrf.mxu0
  %v748 = vadd.f32 %v478, %v747
  %749 = vmatmul.f32.gmra.mxu0 %v620
  %v750 = vpop.f32.mrf.mxu0
  %v751 = vadd.f32 %v483, %v750
  %752 = vmatmul.f32.gmra.mxu0 %v623
  %v753 = vpop.f32.mrf.mxu0
  %v754 = vadd.f32 %v488, %v753
  %755 = vmatmul.f32.gmra.mxu0 %v626
  %v756 = vpop.f32.mrf.mxu0
  %v757 = vadd.f32 %v493, %v756
  %758 = vmatmul.f32.gmra.mxu0 %v629
  %v759 = vpop.f32.mrf.mxu0
  %v760 = vadd.f32 %v498, %v759
  %761 = vmatmul.f32.gmra.mxu0 %v632
  %v762 = vpop.f32.mrf.mxu0
  %v763 = vadd.f32 %v503, %v762
  %764 = vmatmul.f32.gmra.mxu0 %v635
  %v765 = vpop.f32.mrf.mxu0
  %v766 = vadd.f32 %v508, %v765
  %767 = vmatmul.f32.gmra.mxu0 %v638
  %v768 = vpop.f32.mrf.mxu0
  %v769 = vadd.f32 %v513, %v768
  %770 = vmatmul.f32.gmra.mxu0 %v641
  %v771 = vpop.f32.mrf.mxu0
  %v772 = vadd.f32 %v518, %v771
  %773 = vmatmul.f32.gmra.mxu0 %v644
  %v774 = vpop.f32.mrf.mxu0
  %v775 = vadd.f32 %v523, %v774
  %776 = vmatmul.f32.gmra.mxu0 %v647
  %v777 = vpop.f32.mrf.mxu0
  %v778 = vadd.f32 %v528, %v777
  %779 = vmatmul.f32.gmra.mxu0 %v650
  %v780 = vpop.f32.mrf.mxu0
  %v781 = vadd.f32 %v533, %v780
  %782 = vmatmul.f32.gmra.mxu0 %v653
  %v783 = vpop.f32.mrf.mxu0
  %v784 = vadd.f32 %v538, %v783
  %785 = vdwg.mxu0
  %786 = vmatpush.msra.mxu0 0.0
  %787 = vmatpush.msra.mxu0 0.0
  %788 = vmatpush.msra.mxu0 0.0
  %789 = vmatpush.msra.mxu0 0.0
  %790 = vmatpush.msra.mxu0 0.0
  %791 = vmatpush.msra.mxu0 0.0
  %792 = vmatpush.msra.mxu0 0.0
  %793 = vmatpush.msra.mxu0 0.0
  %794 = vmatpush.msra.mxu0 0.0
  %795 = vmatpush.msra.mxu0 0.0
  %796 = vmatpush.msra.mxu0 0.0
  %797 = vmatpush.msra.mxu0 0.0
  %798 = vmatpush.msra.mxu0 0.0
  %799 = vmatpush.msra.mxu0 0.0
  %800 = vmatpush.msra.mxu0 0.0
  %801 = vmatpush.msra.mxu0 %v271
  %802 = vmatmul.f32.gmra.mxu0 %v542
  %v803 = vpop.f32.mrf.mxu0
  %v804 = vadd.f32 %v353, %v803
  %805 = vmatmul.f32.gmra.mxu0 %v545
  %v806 = vpop.f32.mrf.mxu0
  %v807 = vadd.f32 %v358, %v806
  %808 = vmatmul.f32.gmra.mxu0 %v548
  %v809 = vpop.f32.mrf.mxu0
  %v810 = vadd.f32 %v363, %v809
  %811 = vmatmul.f32.gmra.mxu0 %v551
  %v812 = vpop.f32.mrf.mxu0
  %v813 = vadd.f32 %v368, %v812
  %814 = vmatmul.f32.gmra.mxu0 %v554
  %v815 = vpop.f32.mrf.mxu0
  %v816 = vadd.f32 %v373, %v815
  %817 = vmatmul.f32.gmra.mxu0 %v557
  %v818 = vpop.f32.mrf.mxu0
  %v819 = vadd.f32 %v378, %v818
  %820 = vmatmul.f32.gmra.mxu0 %v560
  %v821 = vpop.f32.mrf.mxu0
  %v822 = vadd.f32 %v383, %v821
  %823 = vmatmul.f32.gmra.mxu0 %v563
  %v824 = vpop.f32.mrf.mxu0
  %v825 = vadd.f32 %v388, %v824
  %826 = vmatmul.f32.gmra.mxu0 %v566
  %v827 = vpop.f32.mrf.mxu0
  %v828 = vadd.f32 %v393, %v827
  %829 = vmatmul.f32.gmra.mxu0 %v569
  %v830 = vpop.f32.mrf.mxu0
  %v831 = vadd.f32 %v398, %v830
  %832 = vmatmul.f32.gmra.mxu0 %v572
  %v833 = vpop.f32.mrf.mxu0
  %v834 = vadd.f32 %v403, %v833
  %835 = vmatmul.f32.gmra.mxu0 %v575
  %v836 = vpop.f32.mrf.mxu0
  %v837 = vadd.f32 %v408, %v836
  %838 = vmatmul.f32.gmra.mxu0 %v578
  %v839 = vpop.f32.mrf.mxu0
  %v840 = vadd.f32 %v413, %v839
  %841 = vmatmul.f32.gmra.mxu0 %v581
  %v842 = vpop.f32.mrf.mxu0
  %v843 = vadd.f32 %v418, %v842
  %844 = vmatmul.f32.gmra.mxu0 %v584
  %v845 = vpop.f32.mrf.mxu0
  %v846 = vadd.f32 %v423, %v845
  %847 = vmatmul.f32.gmra.mxu0 %v587
  %v848 = vpop.f32.mrf.mxu0
  %v849 = vadd.f32 %v428, %v848
  %850 = vmatmul.f32.gmra.mxu0 %v590
  %v851 = vpop.f32.mrf.mxu0
  %v852 = vadd.f32 %v433, %v851
  %853 = vmatmul.f32.gmra.mxu0 %v593
  %v854 = vpop.f32.mrf.mxu0
  %v855 = vadd.f32 %v438, %v854
  %856 = vmatmul.f32.gmra.mxu0 %v596
  %v857 = vpop.f32.mrf.mxu0
  %v858 = vadd.f32 %v443, %v857
  %859 = vmatmul.f32.gmra.mxu0 %v599
  %v860 = vpop.f32.mrf.mxu0
  %v861 = vadd.f32 %v448, %v860
  %862 = vmatmul.f32.gmra.mxu0 %v602
  %v863 = vpop.f32.mrf.mxu0
  %v864 = vadd.f32 %v453, %v863
  %865 = vmatmul.f32.gmra.mxu0 %v605
  %v866 = vpop.f32.mrf.mxu0
  %v867 = vadd.f32 %v458, %v866
  %868 = vmatmul.f32.gmra.mxu0 %v608
  %v869 = vpop.f32.mrf.mxu0
  %v870 = vadd.f32 %v463, %v869
  %871 = vmatmul.f32.gmra.mxu0 %v611
  %v872 = vpop.f32.mrf.mxu0
  %v873 = vadd.f32 %v468, %v872
  %874 = vmatmul.f32.gmra.mxu0 %v614
  %v875 = vpop.f32.mrf.mxu0
  %v876 = vadd.f32 %v473, %v875
  %877 = vmatmul.f32.gmra.mxu0 %v617
  %v878 = vpop.f32.mrf.mxu0
  %v879 = vadd.f32 %v478, %v878
  %880 = vmatmul.f32.gmra.mxu0 %v620
  %v881 = vpop.f32.mrf.mxu0
  %v882 = vadd.f32 %v483, %v881
  %883 = vmatmul.f32.gmra.mxu0 %v623
  %v884 = vpop.f32.mrf.mxu0
  %v885 = vadd.f32 %v488, %v884
  %886 = vmatmul.f32.gmra.mxu0 %v626
  %v887 = vpop.f32.mrf.mxu0
  %v888 = vadd.f32 %v493, %v887
  %889 = vmatmul.f32.gmra.mxu0 %v629
  %v890 = vpop.f32.mrf.mxu0
  %v891 = vadd.f32 %v498, %v890
  %892 = vmatmul.f32.gmra.mxu0 %v632
  %v893 = vpop.f32.mrf.mxu0
  %v894 = vadd.f32 %v503, %v893
  %895 = vmatmul.f32.gmra.mxu0 %v635
  %v896 = vpop.f32.mrf.mxu0
  %v897 = vadd.f32 %v508, %v896
  %898 = vmatmul.f32.gmra.mxu0 %v638
  %v899 = vpop.f32.mrf.mxu0
  %v900 = vadd.f32 %v513, %v899
  %901 = vmatmul.f32.gmra.mxu0 %v641
  %v902 = vpop.f32.mrf.mxu0
  %v903 = vadd.f32 %v518, %v902
  %904 = vmatmul.f32.gmra.mxu0 %v644
  %v905 = vpop.f32.mrf.mxu0
  %v906 = vadd.f32 %v523, %v905
  %907 = vmatmul.f32.gmra.mxu0 %v647
  %v908 = vpop.f32.mrf.mxu0
  %v909 = vadd.f32 %v528, %v908
  %910 = vmatmul.f32.gmra.mxu0 %v650
  %v911 = vpop.f32.mrf.mxu0
  %v912 = vadd.f32 %v533, %v911
  %913 = vmatmul.f32.gmra.mxu0 %v653
  %v914 = vpop.f32.mrf.mxu0
  %v915 = vadd.f32 %v538, %v914
  %916 = vdwg.mxu0
  %917 = vmatpush.msra.mxu0 0.0
  %918 = vmatpush.msra.mxu0 0.0
  %919 = vmatpush.msra.mxu0 0.0
  %920 = vmatpush.msra.mxu0 0.0
  %921 = vmatpush.msra.mxu0 0.0
  %922 = vmatpush.msra.mxu0 0.0
  %923 = vmatpush.msra.mxu0 0.0
  %924 = vmatpush.msra.mxu0 0.0
  %925 = vmatpush.msra.mxu0 0.0
  %926 = vmatpush.msra.mxu0 0.0
  %927 = vmatpush.msra.mxu0 0.0
  %928 = vmatpush.msra.mxu0 0.0
  %929 = vmatpush.msra.mxu0 0.0
  %930 = vmatpush.msra.mxu0 0.0
  %931 = vmatpush.msra.mxu0 0.0
  %932 = vmatpush.msra.mxu0 %v272
  %933 = vmatmul.f32.gmra.mxu0 %v542
  %v934 = vpop.f32.mrf.mxu0
  %v935 = vadd.f32 %v353, %v934
  %936 = vmatmul.f32.gmra.mxu0 %v545
  %v937 = vpop.f32.mrf.mxu0
  %v938 = vadd.f32 %v358, %v937
  %939 = vmatmul.f32.gmra.mxu0 %v548
  %v940 = vpop.f32.mrf.mxu0
  %v941 = vadd.f32 %v363, %v940
  %942 = vmatmul.f32.gmra.mxu0 %v551
  %v943 = vpop.f32.mrf.mxu0
  %v944 = vadd.f32 %v368, %v943
  %945 = vmatmul.f32.gmra.mxu0 %v554
  %v946 = vpop.f32.mrf.mxu0
  %v947 = vadd.f32 %v373, %v946
  %948 = vmatmul.f32.gmra.mxu0 %v557
  %v949 = vpop.f32.mrf.mxu0
  %v950 = vadd.f32 %v378, %v949
  %951 = vmatmul.f32.gmra.mxu0 %v560
  %v952 = vpop.f32.mrf.mxu0
  %v953 = vadd.f32 %v383, %v952
  %954 = vmatmul.f32.gmra.mxu0 %v563
  %v955 = vpop.f32.mrf.mxu0
  %v956 = vadd.f32 %v388, %v955
  %957 = vmatmul.f32.gmra.mxu0 %v566
  %v958 = vpop.f32.mrf.mxu0
  %v959 = vadd.f32 %v393, %v958
  %960 = vmatmul.f32.gmra.mxu0 %v569
  %v961 = vpop.f32.mrf.mxu0
  %v962 = vadd.f32 %v398, %v961
  %963 = vmatmul.f32.gmra.mxu0 %v572
  %v964 = vpop.f32.mrf.mxu0
  %v965 = vadd.f32 %v403, %v964
  %966 = vmatmul.f32.gmra.mxu0 %v575
  %v967 = vpop.f32.mrf.mxu0
  %v968 = vadd.f32 %v408, %v967
  %969 = vmatmul.f32.gmra.mxu0 %v578
  %v970 = vpop.f32.mrf.mxu0
  %v971 = vadd.f32 %v413, %v970
  %972 = vmatmul.f32.gmra.mxu0 %v581
  %v973 = vpop.f32.mrf.mxu0
  %v974 = vadd.f32 %v418, %v973
  %975 = vmatmul.f32.gmra.mxu0 %v584
  %v976 = vpop.f32.mrf.mxu0
  %v977 = vadd.f32 %v423, %v976
  %978 = vmatmul.f32.gmra.mxu0 %v587
  %v979 = vpop.f32.mrf.mxu0
  %v980 = vadd.f32 %v428, %v979
  %981 = vmatmul.f32.gmra.mxu0 %v590
  %v982 = vpop.f32.mrf.mxu0
  %v983 = vadd.f32 %v433, %v982
  %984 = vmatmul.f32.gmra.mxu0 %v593
  %v985 = vpop.f32.mrf.mxu0
  %v986 = vadd.f32 %v438, %v985
  %987 = vmatmul.f32.gmra.mxu0 %v596
  %v988 = vpop.f32.mrf.mxu0
  %v989 = vadd.f32 %v443, %v988
  %990 = vmatmul.f32.gmra.mxu0 %v599
  %v991 = vpop.f32.mrf.mxu0
  %v992 = vadd.f32 %v448, %v991
  %993 = vmatmul.f32.gmra.mxu0 %v602
  %v994 = vpop.f32.mrf.mxu0
  %v995 = vadd.f32 %v453, %v994
  %996 = vmatmul.f32.gmra.mxu0 %v605
  %v997 = vpop.f32.mrf.mxu0
  %v998 = vadd.f32 %v458, %v997
  %999 = vmatmul.f32.gmra.mxu0 %v608
  %v1000 = vpop.f32.mrf.mxu0
  %v1001 = vadd.f32 %v463, %v1000
  %1002 = vmatmul.f32.gmra.mxu0 %v611
  %v1003 = vpop.f32.mrf.mxu0
  %v1004 = vadd.f32 %v468, %v1003
  %1005 = vmatmul.f32.gmra.mxu0 %v614
  %v1006 = vpop.f32.mrf.mxu0
  %v1007 = vadd.f32 %v473, %v1006
  %1008 = vmatmul.f32.gmra.mxu0 %v617
  %v1009 = vpop.f32.mrf.mxu0
  %v1010 = vadd.f32 %v478, %v1009
  %1011 = vmatmul.f32.gmra.mxu0 %v620
  %v1012 = vpop.f32.mrf.mxu0
  %v1013 = vadd.f32 %v483, %v1012
  %1014 = vmatmul.f32.gmra.mxu0 %v623
  %v1015 = vpop.f32.mrf.mxu0
  %v1016 = vadd.f32 %v488, %v1015
  %1017 = vmatmul.f32.gmra.mxu0 %v626
  %v1018 = vpop.f32.mrf.mxu0
  %v1019 = vadd.f32 %v493, %v1018
  %1020 = vmatmul.f32.gmra.mxu0 %v629
  %v1021 = vpop.f32.mrf.mxu0
  %v1022 = vadd.f32 %v498, %v1021
  %1023 = vmatmul.f32.gmra.mxu0 %v632
  %v1024 = vpop.f32.mrf.mxu0
  %v1025 = vadd.f32 %v503, %v1024
  %1026 = vmatmul.f32.gmra.mxu0 %v635
  %v1027 = vpop.f32.mrf.mxu0
  %v1028 = vadd.f32 %v508, %v1027
  %1029 = vmatmul.f32.gmra.mxu0 %v638
  %v1030 = vpop.f32.mrf.mxu0
  %v1031 = vadd.f32 %v513, %v1030
  %1032 = vmatmul.f32.gmra.mxu0 %v641
  %v1033 = vpop.f32.mrf.mxu0
  %v1034 = vadd.f32 %v518, %v1033
  %1035 = vmatmul.f32.gmra.mxu0 %v644
  %v1036 = vpop.f32.mrf.mxu0
  %v1037 = vadd.f32 %v523, %v1036
  %1038 = vmatmul.f32.gmra.mxu0 %v647
  %v1039 = vpop.f32.mrf.mxu0
  %v1040 = vadd.f32 %v528, %v1039
  %1041 = vmatmul.f32.gmra.mxu0 %v650
  %v1042 = vpop.f32.mrf.mxu0
  %v1043 = vadd.f32 %v533, %v1042
  %1044 = vmatmul.f32.gmra.mxu0 %v653
  %v1045 = vpop.f32.mrf.mxu0
  %v1046 = vadd.f32 %v538, %v1045
  %1047 = vdwg.mxu0
  %1048 = vmatpush.msra.mxu0 0.0
  %1049 = vmatpush.msra.mxu0 0.0
  %1050 = vmatpush.msra.mxu0 0.0
  %1051 = vmatpush.msra.mxu0 0.0
  %1052 = vmatpush.msra.mxu0 0.0
  %1053 = vmatpush.msra.mxu0 0.0
  %1054 = vmatpush.msra.mxu0 0.0
  %1055 = vmatpush.msra.mxu0 0.0
  %1056 = vmatpush.msra.mxu0 0.0
  %1057 = vmatpush.msra.mxu0 0.0
  %1058 = vmatpush.msra.mxu0 0.0
  %1059 = vmatpush.msra.mxu0 0.0
  %1060 = vmatpush.msra.mxu0 0.0
  %1061 = vmatpush.msra.mxu0 0.0
  %1062 = vmatpush.msra.mxu0 0.0
  %1063 = vmatpush.msra.mxu0 %v273
  %1064 = vmatmul.f32.gmra.mxu0 %v542
  %v1065 = vpop.f32.mrf.mxu0
  %v1066 = vadd.f32 %v353, %v1065
  %1067 = vmatmul.f32.gmra.mxu0 %v545
  %v1068 = vpop.f32.mrf.mxu0
  %v1069 = vadd.f32 %v358, %v1068
  %1070 = vmatmul.f32.gmra.mxu0 %v548
  %v1071 = vpop.f32.mrf.mxu0
  %v1072 = vadd.f32 %v363, %v1071
  %1073 = vmatmul.f32.gmra.mxu0 %v551
  %v1074 = vpop.f32.mrf.mxu0
  %v1075 = vadd.f32 %v368, %v1074
  %1076 = vmatmul.f32.gmra.mxu0 %v554
  %v1077 = vpop.f32.mrf.mxu0
  %v1078 = vadd.f32 %v373, %v1077
  %1079 = vmatmul.f32.gmra.mxu0 %v557
  %v1080 = vpop.f32.mrf.mxu0
  %v1081 = vadd.f32 %v378, %v1080
  %1082 = vmatmul.f32.gmra.mxu0 %v560
  %v1083 = vpop.f32.mrf.mxu0
  %v1084 = vadd.f32 %v383, %v1083
  %1085 = vmatmul.f32.gmra.mxu0 %v563
  %v1086 = vpop.f32.mrf.mxu0
  %v1087 = vadd.f32 %v388, %v1086
  %1088 = vmatmul.f32.gmra.mxu0 %v566
  %v1089 = vpop.f32.mrf.mxu0
  %v1090 = vadd.f32 %v393, %v1089
  %1091 = vmatmul.f32.gmra.mxu0 %v569
  %v1092 = vpop.f32.mrf.mxu0
  %v1093 = vadd.f32 %v398, %v1092
  %1094 = vmatmul.f32.gmra.mxu0 %v572
  %v1095 = vpop.f32.mrf.mxu0
  %v1096 = vadd.f32 %v403, %v1095
  %1097 = vmatmul.f32.gmra.mxu0 %v575
  %v1098 = vpop.f32.mrf.mxu0
  %v1099 = vadd.f32 %v408, %v1098
  %1100 = vmatmul.f32.gmra.mxu0 %v578
  %v1101 = vpop.f32.mrf.mxu0
  %v1102 = vadd.f32 %v413, %v1101
  %1103 = vmatmul.f32.gmra.mxu0 %v581
  %v1104 = vpop.f32.mrf.mxu0
  %v1105 = vadd.f32 %v418, %v1104
  %1106 = vmatmul.f32.gmra.mxu0 %v584
  %v1107 = vpop.f32.mrf.mxu0
  %v1108 = vadd.f32 %v423, %v1107
  %1109 = vmatmul.f32.gmra.mxu0 %v587
  %v1110 = vpop.f32.mrf.mxu0
  %v1111 = vadd.f32 %v428, %v1110
  %1112 = vmatmul.f32.gmra.mxu0 %v590
  %v1113 = vpop.f32.mrf.mxu0
  %v1114 = vadd.f32 %v433, %v1113
  %1115 = vmatmul.f32.gmra.mxu0 %v593
  %v1116 = vpop.f32.mrf.mxu0
  %v1117 = vadd.f32 %v438, %v1116
  %1118 = vmatmul.f32.gmra.mxu0 %v596
  %v1119 = vpop.f32.mrf.mxu0
  %v1120 = vadd.f32 %v443, %v1119
  %1121 = vmatmul.f32.gmra.mxu0 %v599
  %v1122 = vpop.f32.mrf.mxu0
  %v1123 = vadd.f32 %v448, %v1122
  %1124 = vmatmul.f32.gmra.mxu0 %v602
  %v1125 = vpop.f32.mrf.mxu0
  %v1126 = vadd.f32 %v453, %v1125
  %1127 = vmatmul.f32.gmra.mxu0 %v605
  %v1128 = vpop.f32.mrf.mxu0
  %v1129 = vadd.f32 %v458, %v1128
  %1130 = vmatmul.f32.gmra.mxu0 %v608
  %v1131 = vpop.f32.mrf.mxu0
  %v1132 = vadd.f32 %v463, %v1131
  %1133 = vmatmul.f32.gmra.mxu0 %v611
  %v1134 = vpop.f32.mrf.mxu0
  %v1135 = vadd.f32 %v468, %v1134
  %1136 = vmatmul.f32.gmra.mxu0 %v614
  %v1137 = vpop.f32.mrf.mxu0
  %v1138 = vadd.f32 %v473, %v1137
  %1139 = vmatmul.f32.gmra.mxu0 %v617
  %v1140 = vpop.f32.mrf.mxu0
  %v1141 = vadd.f32 %v478, %v1140
  %1142 = vmatmul.f32.gmra.mxu0 %v620
  %v1143 = vpop.f32.mrf.mxu0
  %v1144 = vadd.f32 %v483, %v1143
  %1145 = vmatmul.f32.gmra.mxu0 %v623
  %v1146 = vpop.f32.mrf.mxu0
  %v1147 = vadd.f32 %v488, %v1146
  %1148 = vmatmul.f32.gmra.mxu0 %v626
  %v1149 = vpop.f32.mrf.mxu0
  %v1150 = vadd.f32 %v493, %v1149
  %1151 = vmatmul.f32.gmra.mxu0 %v629
  %v1152 = vpop.f32.mrf.mxu0
  %v1153 = vadd.f32 %v498, %v1152
  %1154 = vmatmul.f32.gmra.mxu0 %v632
  %v1155 = vpop.f32.mrf.mxu0
  %v1156 = vadd.f32 %v503, %v1155
  %1157 = vmatmul.f32.gmra.mxu0 %v635
  %v1158 = vpop.f32.mrf.mxu0
  %v1159 = vadd.f32 %v508, %v1158
  %1160 = vmatmul.f32.gmra.mxu0 %v638
  %v1161 = vpop.f32.mrf.mxu0
  %v1162 = vadd.f32 %v513, %v1161
  %1163 = vmatmul.f32.gmra.mxu0 %v641
  %v1164 = vpop.f32.mrf.mxu0
  %v1165 = vadd.f32 %v518, %v1164
  %1166 = vmatmul.f32.gmra.mxu0 %v644
  %v1167 = vpop.f32.mrf.mxu0
  %v1168 = vadd.f32 %v523, %v1167
  %1169 = vmatmul.f32.gmra.mxu0 %v647
  %v1170 = vpop.f32.mrf.mxu0
  %v1171 = vadd.f32 %v528, %v1170
  %1172 = vmatmul.f32.gmra.mxu0 %v650
  %v1173 = vpop.f32.mrf.mxu0
  %v1174 = vadd.f32 %v533, %v1173
  %1175 = vmatmul.f32.gmra.mxu0 %v653
  %v1176 = vpop.f32.mrf.mxu0
  %v1177 = vadd.f32 %v538, %v1176
  %1178 = vdwg.mxu0
  %v1179 = vmax.f32 %v673, 0.0
  %v1180 = vmax.f32 %v804, 0.0
  %v1181 = vmax.f32 %v935, 0.0
  %v1182 = vmax.f32 %v1066, 0.0
  %v1183 = vmax.f32 %v676, 0.0
  %v1184 = vmax.f32 %v807, 0.0
  %v1185 = vmax.f32 %v938, 0.0
  %v1186 = vmax.f32 %v1069, 0.0
  %v1187 = vmax.f32 %v679, 0.0
  %v1188 = vmax.f32 %v810, 0.0
  %v1189 = vmax.f32 %v941, 0.0
  %v1190 = vmax.f32 %v1072, 0.0
  %v1191 = vmax.f32 %v682, 0.0
  %v1192 = vmax.f32 %v813, 0.0
  %v1193 = vmax.f32 %v944, 0.0
  %v1194 = vmax.f32 %v1075, 0.0
  %v1195 = vmax.f32 %v685, 0.0
  %v1196 = vmax.f32 %v816, 0.0
  %v1197 = vmax.f32 %v947, 0.0
  %v1198 = vmax.f32 %v1078, 0.0
  %v1199 = vmax.f32 %v688, 0.0
  %v1200 = vmax.f32 %v819, 0.0
  %v1201 = vmax.f32 %v950, 0.0
  %v1202 = vmax.f32 %v1081, 0.0
  %v1203 = vmax.f32 %v691, 0.0
  %v1204 = vmax.f32 %v822, 0.0
  %v1205 = vmax.f32 %v953, 0.0
  %v1206 = vmax.f32 %v1084, 0.0
  %v1207 = vmax.f32 %v694, 0.0
  %v1208 = vmax.f32 %v825, 0.0
  %v1209 = vmax.f32 %v956, 0.0
  %v1210 = vmax.f32 %v1087, 0.0
  %v1211 = vmax.f32 %v697, 0.0
  %v1212 = vmax.f32 %v828, 0.0
  %v1213 = vmax.f32 %v959, 0.0
  %v1214 = vmax.f32 %v1090, 0.0
  %v1215 = vmax.f32 %v700, 0.0
  %v1216 = vmax.f32 %v831, 0.0
  %v1217 = vmax.f32 %v962, 0.0
  %v1218 = vmax.f32 %v1093, 0.0
  %v1219 = vmax.f32 %v703, 0.0
  %v1220 = vmax.f32 %v834, 0.0
  %v1221 = vmax.f32 %v965, 0.0
  %v1222 = vmax.f32 %v1096, 0.0
  %v1223 = vmax.f32 %v706, 0.0
  %v1224 = vmax.f32 %v837, 0.0
  %v1225 = vmax.f32 %v968, 0.0
  %v1226 = vmax.f32 %v1099, 0.0
  %v1227 = vmax.f32 %v709, 0.0
  %v1228 = vmax.f32 %v840, 0.0
  %v1229 = vmax.f32 %v971, 0.0
  %v1230 = vmax.f32 %v1102, 0.0
  %v1231 = vmax.f32 %v712, 0.0
  %v1232 = vmax.f32 %v843, 0.0
  %v1233 = vmax.f32 %v974, 0.0
  %v1234 = vmax.f32 %v1105, 0.0
  %v1235 = vmax.f32 %v715, 0.0
  %v1236 = vmax.f32 %v846, 0.0
  %v1237 = vmax.f32 %v977, 0.0
  %v1238 = vmax.f32 %v1108, 0.0
  %v1239 = vmax.f32 %v718, 0.0
  %v1240 = vmax.f32 %v849, 0.0
  %v1241 = vmax.f32 %v980, 0.0
  %v1242 = vmax.f32 %v1111, 0.0
  %v1243 = vmax.f32 %v721, 0.0
  %v1244 = vmax.f32 %v852, 0.0
  %v1245 = vmax.f32 %v983, 0.0
  %v1246 = vmax.f32 %v1114, 0.0
  %v1247 = vmax.f32 %v724, 0.0
  %v1248 = vmax.f32 %v855, 0.0
  %v1249 = vmax.f32 %v986, 0.0
  %v1250 = vmax.f32 %v1117, 0.0
  %v1251 = vmax.f32 %v727, 0.0
  %v1252 = vmax.f32 %v858, 0.0
  %v1253 = vmax.f32 %v989, 0.0
  %v1254 = vmax.f32 %v1120, 0.0
  %v1255 = vmax.f32 %v730, 0.0
  %v1256 = vmax.f32 %v861, 0.0
  %v1257 = vmax.f32 %v992, 0.0
  %v1258 = vmax.f32 %v1123, 0.0
  %v1259 = vmax.f32 %v733, 0.0
  %v1260 = vmax.f32 %v864, 0.0
  %v1261 = vmax.f32 %v995, 0.0
  %v1262 = vmax.f32 %v1126, 0.0
  %v1263 = vmax.f32 %v736, 0.0
  %v1264 = vmax.f32 %v867, 0.0
  %v1265 = vmax.f32 %v998, 0.0
  %v1266 = vmax.f32 %v1129, 0.0
  %v1267 = vmax.f32 %v739, 0.0
  %v1268 = vmax.f32 %v870, 0.0
  %v1269 = vmax.f32 %v1001, 0.0
  %v1270 = vmax.f32 %v1132, 0.0
  %v1271 = vmax.f32 %v742, 0.0
  %v1272 = vmax.f32 %v873, 0.0
  %v1273 = vmax.f32 %v1004, 0.0
  %v1274 = vmax.f32 %v1135, 0.0
  %v1275 = vmax.f32 %v745, 0.0
  %v1276 = vmax.f32 %v876, 0.0
  %v1277 = vmax.f32 %v1007, 0.0
  %v1278 = vmax.f32 %v1138, 0.0
  %v1279 = vmax.f32 %v748, 0.0
  %v1280 = vmax.f32 %v879, 0.0
  %v1281 = vmax.f32 %v1010, 0.0
  %v1282 = vmax.f32 %v1141, 0.0
  %v1283 = vmax.f32 %v751, 0.0
  %v1284 = vmax.f32 %v882, 0.0
  %v1285 = vmax.f32 %v1013, 0.0
  %v1286 = vmax.f32 %v1144, 0.0
  %v1287 = vmax.f32 %v754, 0.0
  %v1288 = vmax.f32 %v885, 0.0
  %v1289 = vmax.f32 %v1016, 0.0
  %v1290 = vmax.f32 %v1147, 0.0
  %v1291 = vmax.f32 %v757, 0.0
  %v1292 = vmax.f32 %v888, 0.0
  %v1293 = vmax.f32 %v1019, 0.0
  %v1294 = vmax.f32 %v1150, 0.0
  %v1295 = vmax.f32 %v760, 0.0
  %v1296 = vmax.f32 %v891, 0.0
  %v1297 = vmax.f32 %v1022, 0.0
  %v1298 = vmax.f32 %v1153, 0.0
  %v1299 = vmax.f32 %v763, 0.0
  %v1300 = vmax.f32 %v894, 0.0
  %v1301 = vmax.f32 %v1025, 0.0
  %v1302 = vmax.f32 %v1156, 0.0
  %v1303 = vmax.f32 %v766, 0.0
  %v1304 = vmax.f32 %v897, 0.0
  %v1305 = vmax.f32 %v1028, 0.0
  %v1306 = vmax.f32 %v1159, 0.0
  %v1307 = vmax.f32 %v769, 0.0
  %v1308 = vmax.f32 %v900, 0.0
  %v1309 = vmax.f32 %v1031, 0.0
  %v1310 = vmax.f32 %v1162, 0.0
  %v1311 = vmax.f32 %v772, 0.0
  %v1312 = vmax.f32 %v903, 0.0
  %v1313 = vmax.f32 %v1034, 0.0
  %v1314 = vmax.f32 %v1165, 0.0
  %v1315 = vmax.f32 %v775, 0.0
  %v1316 = vmax.f32 %v906, 0.0
  %v1317 = vmax.f32 %v1037, 0.0
  %v1318 = vmax.f32 %v1168, 0.0
  %v1319 = vmax.f32 %v778, 0.0
  %v1320 = vmax.f32 %v909, 0.0
  %v1321 = vmax.f32 %v1040, 0.0
  %v1322 = vmax.f32 %v1171, 0.0
  %v1323 = vmax.f32 %v781, 0.0
  %v1324 = vmax.f32 %v912, 0.0
  %v1325 = vmax.f32 %v1043, 0.0
  %v1326 = vmax.f32 %v1174, 0.0
  %v1327 = vmax.f32 %v784, 0.0
  %v1328 = vmax.f32 %v915, 0.0
  %v1329 = vmax.f32 %v1046, 0.0
  %v1330 = vmax.f32 %v1177, 0.0
  %v1331 = vld [vmem:[%s1] sm:$0xff]
  %v1332 = vld [vmem:[%s1 + $0x8] sm:$0xff]
  %v1333 = vld [vmem:[%s1 + $0x10] sm:$0xff]
  %v1334 = vld [vmem:[%s1 + $0x18] sm:$0xff]
  %v1335 = vperm.slane %v1331, 0
  %v1336 = vperm.slane %v1332, 0
  %v1337 = vperm.slane %v1333, 0
  %v1338 = vperm.slane %v1334, 0
  %v1339 = vmul.f32 %v1335, %v1183
  %v1340 = vmul.f32 %v1336, %v1184
  %v1341 = vmul.f32 %v1337, %v1185
  %v1342 = vmul.f32 %v1338, %v1186
  %v1343 = vmul.f32 %v1335, %v1259
  %v1344 = vmul.f32 %v1336, %v1260
  %v1345 = vmul.f32 %v1337, %v1261
  %v1346 = vmul.f32 %v1338, %v1262
  %v1347 = vadd.f32 %v1179, %v1339
  %v1348 = vadd.f32 %v1180, %v1340
  %v1349 = vadd.f32 %v1181, %v1341
  %v1350 = vadd.f32 %v1182, %v1342
  %v1351 = vadd.f32 %v1255, %v1343
  %v1352 = vadd.f32 %v1256, %v1344
  %v1353 = vadd.f32 %v1257, %v1345
  %v1354 = vadd.f32 %v1258, %v1346
  %v1355 = vperm.slane %v1331, 1
  %v1356 = vperm.slane %v1332, 1
  %v1357 = vperm.slane %v1333, 1
  %v1358 = vperm.slane %v1334, 1
  %v1359 = vmul.f32 %v1355, %v1187
  %v1360 = vmul.f32 %v1356, %v1188
  %v1361 = vmul.f32 %v1357, %v1189
  %v1362 = vmul.f32 %v1358, %v1190
  %v1363 = vmul.f32 %v1355, %v1263
  %v1364 = vmul.f32 %v1356, %v1264
  %v1365 = vmul.f32 %v1357, %v1265
  %v1366 = vmul.f32 %v1358, %v1266
  %v1367 = vadd.f32 %v1347, %v1359
  %v1368 = vadd.f32 %v1348, %v1360
  %v1369 = vadd.f32 %v1349, %v1361
  %v1370 = vadd.f32 %v1350, %v1362
  %v1371 = vadd.f32 %v1351, %v1363
  %v1372 = vadd.f32 %v1352, %v1364
  %v1373 = vadd.f32 %v1353, %v1365
  %v1374 = vadd.f32 %v1354, %v1366
  %v1375 = vperm.slane %v1331, 2
  %v1376 = vperm.slane %v1332, 2
  %v1377 = vperm.slane %v1333, 2
  %v1378 = vperm.slane %v1334, 2
  %v1379 = vmul.f32 %v1375, %v1191
  %v1380 = vmul.f32 %v1376, %v1192
  %v1381 = vmul.f32 %v1377, %v1193
  %v1382 = vmul.f32 %v1378, %v1194
  %v1383 = vmul.f32 %v1375, %v1267
  %v1384 = vmul.f32 %v1376, %v1268
  %v1385 = vmul.f32 %v1377, %v1269
  %v1386 = vmul.f32 %v1378, %v1270
  %v1387 = vadd.f32 %v1367, %v1379
  %v1388 = vadd.f32 %v1368, %v1380
  %v1389 = vadd.f32 %v1369, %v1381
  %v1390 = vadd.f32 %v1370, %v1382
  %v1391 = vadd.f32 %v1371, %v1383
  %v1392 = vadd.f32 %v1372, %v1384
  %v1393 = vadd.f32 %v1373, %v1385
  %v1394 = vadd.f32 %v1374, %v1386
  %v1395 = vperm.slane %v1331, 3
  %v1396 = vperm.slane %v1332, 3
  %v1397 = vperm.slane %v1333, 3
  %v1398 = vperm.slane %v1334, 3
  %v1399 = vmul.f32 %v1395, %v1195
  %v1400 = vmul.f32 %v1396, %v1196
  %v1401 = vmul.f32 %v1397, %v1197
  %v1402 = vmul.f32 %v1398, %v1198
  %v1403 = vmul.f32 %v1395, %v1271
  %v1404 = vmul.f32 %v1396, %v1272
  %v1405 = vmul.f32 %v1397, %v1273
  %v1406 = vmul.f32 %v1398, %v1274
  %v1407 = vadd.f32 %v1387, %v1399
  %v1408 = vadd.f32 %v1388, %v1400
  %v1409 = vadd.f32 %v1389, %v1401
  %v1410 = vadd.f32 %v1390, %v1402
  %v1411 = vadd.f32 %v1391, %v1403
  %v1412 = vadd.f32 %v1392, %v1404
  %v1413 = vadd.f32 %v1393, %v1405
  %v1414 = vadd.f32 %v1394, %v1406
  %v1415 = vperm.slane %v1331, 4
  %v1416 = vperm.slane %v1332, 4
  %v1417 = vperm.slane %v1333, 4
  %v1418 = vperm.slane %v1334, 4
  %v1419 = vmul.f32 %v1415, %v1199
  %v1420 = vmul.f32 %v1416, %v1200
  %v1421 = vmul.f32 %v1417, %v1201
  %v1422 = vmul.f32 %v1418, %v1202
  %v1423 = vmul.f32 %v1415, %v1275
  %v1424 = vmul.f32 %v1416, %v1276
  %v1425 = vmul.f32 %v1417, %v1277
  %v1426 = vmul.f32 %v1418, %v1278
  %v1427 = vadd.f32 %v1407, %v1419
  %v1428 = vadd.f32 %v1408, %v1420
  %v1429 = vadd.f32 %v1409, %v1421
  %v1430 = vadd.f32 %v1410, %v1422
  %v1431 = vadd.f32 %v1411, %v1423
  %v1432 = vadd.f32 %v1412, %v1424
  %v1433 = vadd.f32 %v1413, %v1425
  %v1434 = vadd.f32 %v1414, %v1426
  %v1435 = vperm.slane %v1331, 5
  %v1436 = vperm.slane %v1332, 5
  %v1437 = vperm.slane %v1333, 5
  %v1438 = vperm.slane %v1334, 5
  %v1439 = vmul.f32 %v1435, %v1203
  %v1440 = vmul.f32 %v1436, %v1204
  %v1441 = vmul.f32 %v1437, %v1205
  %v1442 = vmul.f32 %v1438, %v1206
  %v1443 = vmul.f32 %v1435, %v1279
  %v1444 = vmul.f32 %v1436, %v1280
  %v1445 = vmul.f32 %v1437, %v1281
  %v1446 = vmul.f32 %v1438, %v1282
  %v1447 = vadd.f32 %v1427, %v1439
  %v1448 = vadd.f32 %v1428, %v1440
  %v1449 = vadd.f32 %v1429, %v1441
  %v1450 = vadd.f32 %v1430, %v1442
  %v1451 = vadd.f32 %v1431, %v1443
  %v1452 = vadd.f32 %v1432, %v1444
  %v1453 = vadd.f32 %v1433, %v1445
  %v1454 = vadd.f32 %v1434, %v1446
  %v1455 = vperm.slane %v1331, 6
  %v1456 = vperm.slane %v1332, 6
  %v1457 = vperm.slane %v1333, 6
  %v1458 = vperm.slane %v1334, 6
  %v1459 = vmul.f32 %v1455, %v1207
  %v1460 = vmul.f32 %v1456, %v1208
  %v1461 = vmul.f32 %v1457, %v1209
  %v1462 = vmul.f32 %v1458, %v1210
  %v1463 = vmul.f32 %v1455, %v1283
  %v1464 = vmul.f32 %v1456, %v1284
  %v1465 = vmul.f32 %v1457, %v1285
  %v1466 = vmul.f32 %v1458, %v1286
  %v1467 = vadd.f32 %v1447, %v1459
  %v1468 = vadd.f32 %v1448, %v1460
  %v1469 = vadd.f32 %v1449, %v1461
  %v1470 = vadd.f32 %v1450, %v1462
  %v1471 = vadd.f32 %v1451, %v1463
  %v1472 = vadd.f32 %v1452, %v1464
  %v1473 = vadd.f32 %v1453, %v1465
  %v1474 = vadd.f32 %v1454, %v1466
  %v1475 = vperm.slane %v1331, 7
  %v1476 = vperm.slane %v1332, 7
  %v1477 = vperm.slane %v1333, 7
  %v1478 = vperm.slane %v1334, 7
  %v1479 = vmul.f32 %v1475, %v1211
  %v1480 = vmul.f32 %v1476, %v1212
  %v1481 = vmul.f32 %v1477, %v1213
  %v1482 = vmul.f32 %v1478, %v1214
  %v1483 = vmul.f32 %v1475, %v1287
  %v1484 = vmul.f32 %v1476, %v1288
  %v1485 = vmul.f32 %v1477, %v1289
  %v1486 = vmul.f32 %v1478, %v1290
  %v1487 = vadd.f32 %v1467, %v1479
  %v1488 = vadd.f32 %v1468, %v1480
  %v1489 = vadd.f32 %v1469, %v1481
  %v1490 = vadd.f32 %v1470, %v1482
  %v1491 = vadd.f32 %v1471, %v1483
  %v1492 = vadd.f32 %v1472, %v1484
  %v1493 = vadd.f32 %v1473, %v1485
  %v1494 = vadd.f32 %v1474, %v1486
  %vm1495 = vcmp.gt.f32.partialorder %v1487, 0.0
  %vm1496 = vcmp.gt.f32.partialorder %v1488, 0.0
  %vm1497 = vcmp.gt.f32.partialorder %v1489, 0.0
  %vm1498 = vcmp.gt.f32.partialorder %v1490, 0.0
  %vm1499 = vcmp.gt.f32.partialorder %v1491, 0.0
  %vm1500 = vcmp.gt.f32.partialorder %v1492, 0.0
  %vm1501 = vcmp.gt.f32.partialorder %v1493, 0.0
  %vm1502 = vcmp.gt.f32.partialorder %v1494, 0.0
  %v1503 = vmul.f32 %v1487, 0.01
  %v1504 = vmul.f32 %v1488, 0.01
  %v1505 = vmul.f32 %v1489, 0.01
  %v1506 = vmul.f32 %v1490, 0.01
  %v1507 = vmul.f32 %v1491, 0.01
  %v1508 = vmul.f32 %v1492, 0.01
  %v1509 = vmul.f32 %v1493, 0.01
  %v1510 = vmul.f32 %v1494, 0.01
  %v1511 = vsel %vm1495, %v1487, %v1503
  %v1512 = vsel %vm1496, %v1488, %v1504
  %v1513 = vsel %vm1497, %v1489, %v1505
  %v1514 = vsel %vm1498, %v1490, %v1506
  %v1515 = vsel %vm1499, %v1491, %v1507
  %v1516 = vsel %vm1500, %v1492, %v1508
  %v1517 = vsel %vm1501, %v1493, %v1509
  %v1518 = vsel %vm1502, %v1494, %v1510
  %v1519 = vperm.slane %v1511, 0
  %v1520 = vperm.slane %v1512, 0
  %v1521 = vperm.slane %v1513, 0
  %v1522 = vperm.slane %v1514, 0
  %v1523 = vperm.slane %v1515, 0
  %v1524 = vperm.slane %v1516, 0
  %v1525 = vperm.slane %v1517, 0
  %v1526 = vperm.slane %v1518, 0
  %v1527 = vmul.f32 %v1519, %v1219
  %v1528 = vmul.f32 %v1520, %v1220
  %v1529 = vmul.f32 %v1521, %v1221
  %v1530 = vmul.f32 %v1522, %v1222
  %v1531 = vmul.f32 %v1523, %v1295
  %v1532 = vmul.f32 %v1524, %v1296
  %v1533 = vmul.f32 %v1525, %v1297
  %v1534 = vmul.f32 %v1526, %v1298
  %v1535 = vadd.f32 %v1215, %v1527
  %v1536 = vadd.f32 %v1216, %v1528
  %v1537 = vadd.f32 %v1217, %v1529
  %v1538 = vadd.f32 %v1218, %v1530
  %v1539 = vadd.f32 %v1291, %v1531
  %v1540 = vadd.f32 %v1292, %v1532
  %v1541 = vadd.f32 %v1293, %v1533
  %v1542 = vadd.f32 %v1294, %v1534
  %v1543 = vperm.slane %v1511, 1
  %v1544 = vperm.slane %v1512, 1
  %v1545 = vperm.slane %v1513, 1
  %v1546 = vperm.slane %v1514, 1
  %v1547 = vperm.slane %v1515, 1
  %v1548 = vperm.slane %v1516, 1
  %v1549 = vperm.slane %v1517, 1
  %v1550 = vperm.slane %v1518, 1
  %v1551 = vmul.f32 %v1543, %v1223
  %v1552 = vmul.f32 %v1544, %v1224
  %v1553 = vmul.f32 %v1545, %v1225
  %v1554 = vmul.f32 %v1546, %v1226
  %v1555 = vmul.f32 %v1547, %v1299
  %v1556 = vmul.f32 %v1548, %v1300
  %v1557 = vmul.f32 %v1549, %v1301
  %v1558 = vmul.f32 %v1550, %v1302
  %v1559 = vadd.f32 %v1535, %v1551
  %v1560 = vadd.f32 %v1536, %v1552
  %v1561 = vadd.f32 %v1537, %v1553
  %v1562 = vadd.f32 %v1538, %v1554
  %v1563 = vadd.f32 %v1539, %v1555
  %v1564 = vadd.f32 %v1540, %v1556
  %v1565 = vadd.f32 %v1541, %v1557
  %v1566 = vadd.f32 %v1542, %v1558
  %v1567 = vperm.slane %v1511, 2
  %v1568 = vperm.slane %v1512, 2
  %v1569 = vperm.slane %v1513, 2
  %v1570 = vperm.slane %v1514, 2
  %v1571 = vperm.slane %v1515, 2
  %v1572 = vperm.slane %v1516, 2
  %v1573 = vperm.slane %v1517, 2
  %v1574 = vperm.slane %v1518, 2
  %v1575 = vmul.f32 %v1567, %v1227
  %v1576 = vmul.f32 %v1568, %v1228
  %v1577 = vmul.f32 %v1569, %v1229
  %v1578 = vmul.f32 %v1570, %v1230
  %v1579 = vmul.f32 %v1571, %v1303
  %v1580 = vmul.f32 %v1572, %v1304
  %v1581 = vmul.f32 %v1573, %v1305
  %v1582 = vmul.f32 %v1574, %v1306
  %v1583 = vadd.f32 %v1559, %v1575
  %v1584 = vadd.f32 %v1560, %v1576
  %v1585 = vadd.f32 %v1561, %v1577
  %v1586 = vadd.f32 %v1562, %v1578
  %v1587 = vadd.f32 %v1563, %v1579
  %v1588 = vadd.f32 %v1564, %v1580
  %v1589 = vadd.f32 %v1565, %v1581
  %v1590 = vadd.f32 %v1566, %v1582
  %v1591 = vperm.slane %v1511, 3
  %v1592 = vperm.slane %v1512, 3
  %v1593 = vperm.slane %v1513, 3
  %v1594 = vperm.slane %v1514, 3
  %v1595 = vperm.slane %v1515, 3
  %v1596 = vperm.slane %v1516, 3
  %v1597 = vperm.slane %v1517, 3
  %v1598 = vperm.slane %v1518, 3
  %v1599 = vmul.f32 %v1591, %v1231
  %v1600 = vmul.f32 %v1592, %v1232
  %v1601 = vmul.f32 %v1593, %v1233
  %v1602 = vmul.f32 %v1594, %v1234
  %v1603 = vmul.f32 %v1595, %v1307
  %v1604 = vmul.f32 %v1596, %v1308
  %v1605 = vmul.f32 %v1597, %v1309
  %v1606 = vmul.f32 %v1598, %v1310
  %v1607 = vadd.f32 %v1583, %v1599
  %v1608 = vadd.f32 %v1584, %v1600
  %v1609 = vadd.f32 %v1585, %v1601
  %v1610 = vadd.f32 %v1586, %v1602
  %v1611 = vadd.f32 %v1587, %v1603
  %v1612 = vadd.f32 %v1588, %v1604
  %v1613 = vadd.f32 %v1589, %v1605
  %v1614 = vadd.f32 %v1590, %v1606
  %vm1615 = vcmp.gt.f32.partialorder %v1607, 0.0
  %vm1616 = vcmp.gt.f32.partialorder %v1608, 0.0
  %vm1617 = vcmp.gt.f32.partialorder %v1609, 0.0
  %vm1618 = vcmp.gt.f32.partialorder %v1610, 0.0
  %vm1619 = vcmp.gt.f32.partialorder %v1611, 0.0
  %vm1620 = vcmp.gt.f32.partialorder %v1612, 0.0
  %vm1621 = vcmp.gt.f32.partialorder %v1613, 0.0
  %vm1622 = vcmp.gt.f32.partialorder %v1614, 0.0
  %v1623 = vmul.f32 %v1607, 0.01
  %v1624 = vmul.f32 %v1608, 0.01
  %v1625 = vmul.f32 %v1609, 0.01
  %v1626 = vmul.f32 %v1610, 0.01
  %v1627 = vmul.f32 %v1611, 0.01
  %v1628 = vmul.f32 %v1612, 0.01
  %v1629 = vmul.f32 %v1613, 0.01
  %v1630 = vmul.f32 %v1614, 0.01
  %v1631 = vsel %vm1615, %v1607, %v1623
  %v1632 = vsel %vm1616, %v1608, %v1624
  %v1633 = vsel %vm1617, %v1609, %v1625
  %v1634 = vsel %vm1618, %v1610, %v1626
  %v1635 = vsel %vm1619, %v1611, %v1627
  %v1636 = vsel %vm1620, %v1612, %v1628
  %v1637 = vsel %vm1621, %v1613, %v1629
  %v1638 = vsel %vm1622, %v1614, %v1630
  %v1639 = vperm.slane %v1631, 0
  %v1640 = vperm.slane %v1632, 0
  %v1641 = vperm.slane %v1633, 0
  %v1642 = vperm.slane %v1634, 0
  %v1643 = vperm.slane %v1635, 0
  %v1644 = vperm.slane %v1636, 0
  %v1645 = vperm.slane %v1637, 0
  %v1646 = vperm.slane %v1638, 0
  %v1647 = vmul.f32 %v1639, %v1239
  %v1648 = vmul.f32 %v1640, %v1240
  %v1649 = vmul.f32 %v1641, %v1241
  %v1650 = vmul.f32 %v1642, %v1242
  %v1651 = vmul.f32 %v1643, %v1315
  %v1652 = vmul.f32 %v1644, %v1316
  %v1653 = vmul.f32 %v1645, %v1317
  %v1654 = vmul.f32 %v1646, %v1318
  %v1655 = vadd.f32 %v1235, %v1647
  %v1656 = vadd.f32 %v1236, %v1648
  %v1657 = vadd.f32 %v1237, %v1649
  %v1658 = vadd.f32 %v1238, %v1650
  %v1659 = vadd.f32 %v1311, %v1651
  %v1660 = vadd.f32 %v1312, %v1652
  %v1661 = vadd.f32 %v1313, %v1653
  %v1662 = vadd.f32 %v1314, %v1654
  %v1663 = vperm.slane %v1631, 1
  %v1664 = vperm.slane %v1632, 1
  %v1665 = vperm.slane %v1633, 1
  %v1666 = vperm.slane %v1634, 1
  %v1667 = vperm.slane %v1635, 1
  %v1668 = vperm.slane %v1636, 1
  %v1669 = vperm.slane %v1637, 1
  %v1670 = vperm.slane %v1638, 1
  %v1671 = vmul.f32 %v1663, %v1243
  %v1672 = vmul.f32 %v1664, %v1244
  %v1673 = vmul.f32 %v1665, %v1245
  %v1674 = vmul.f32 %v1666, %v1246
  %v1675 = vmul.f32 %v1667, %v1319
  %v1676 = vmul.f32 %v1668, %v1320
  %v1677 = vmul.f32 %v1669, %v1321
  %v1678 = vmul.f32 %v1670, %v1322
  %v1679 = vadd.f32 %v1655, %v1671
  %v1680 = vadd.f32 %v1656, %v1672
  %v1681 = vadd.f32 %v1657, %v1673
  %v1682 = vadd.f32 %v1658, %v1674
  %v1683 = vadd.f32 %v1659, %v1675
  %v1684 = vadd.f32 %v1660, %v1676
  %v1685 = vadd.f32 %v1661, %v1677
  %v1686 = vadd.f32 %v1662, %v1678
  %v1687 = vperm.slane %v1631, 2
  %v1688 = vperm.slane %v1632, 2
  %v1689 = vperm.slane %v1633, 2
  %v1690 = vperm.slane %v1634, 2
  %v1691 = vperm.slane %v1635, 2
  %v1692 = vperm.slane %v1636, 2
  %v1693 = vperm.slane %v1637, 2
  %v1694 = vperm.slane %v1638, 2
  %v1695 = vmul.f32 %v1687, %v1247
  %v1696 = vmul.f32 %v1688, %v1248
  %v1697 = vmul.f32 %v1689, %v1249
  %v1698 = vmul.f32 %v1690, %v1250
  %v1699 = vmul.f32 %v1691, %v1323
  %v1700 = vmul.f32 %v1692, %v1324
  %v1701 = vmul.f32 %v1693, %v1325
  %v1702 = vmul.f32 %v1694, %v1326
  %v1703 = vadd.f32 %v1679, %v1695
  %v1704 = vadd.f32 %v1680, %v1696
  %v1705 = vadd.f32 %v1681, %v1697
  %v1706 = vadd.f32 %v1682, %v1698
  %v1707 = vadd.f32 %v1683, %v1699
  %v1708 = vadd.f32 %v1684, %v1700
  %v1709 = vadd.f32 %v1685, %v1701
  %v1710 = vadd.f32 %v1686, %v1702
  %v1711 = vperm.slane %v1631, 3
  %v1712 = vperm.slane %v1632, 3
  %v1713 = vperm.slane %v1633, 3
  %v1714 = vperm.slane %v1634, 3
  %v1715 = vperm.slane %v1635, 3
  %v1716 = vperm.slane %v1636, 3
  %v1717 = vperm.slane %v1637, 3
  %v1718 = vperm.slane %v1638, 3
  %v1719 = vmul.f32 %v1711, %v1251
  %v1720 = vmul.f32 %v1712, %v1252
  %v1721 = vmul.f32 %v1713, %v1253
  %v1722 = vmul.f32 %v1714, %v1254
  %v1723 = vmul.f32 %v1715, %v1327
  %v1724 = vmul.f32 %v1716, %v1328
  %v1725 = vmul.f32 %v1717, %v1329
  %v1726 = vmul.f32 %v1718, %v1330
  %v1727 = vadd.f32 %v1703, %v1719
  %v1728 = vadd.f32 %v1704, %v1720
  %v1729 = vadd.f32 %v1705, %v1721
  %v1730 = vadd.f32 %v1706, %v1722
  %v1731 = vadd.f32 %v1707, %v1723
  %v1732 = vadd.f32 %v1708, %v1724
  %v1733 = vadd.f32 %v1709, %v1725
  %v1734 = vadd.f32 %v1710, %v1726
  %v1735 = vtanh.pop %v1727
  %v1736 = vtanh.pop %v1728
  %v1737 = vtanh.pop %v1729
  %v1738 = vtanh.pop %v1730
  %v1739 = vtanh.pop %v1731
  %v1740 = vtanh.pop %v1732
  %v1741 = vtanh.pop %v1733
  %v1742 = vtanh.pop %v1734
  %v1743 = vmul.f32 %v1735, 0.1
  %v1744 = vmul.f32 %v1736, 0.1
  %v1745 = vmul.f32 %v1737, 0.1
  %v1746 = vmul.f32 %v1738, 0.1
  %v1747 = vmul.f32 %v1739, 0.1
  %v1748 = vmul.f32 %v1740, 0.1
  %v1749 = vmul.f32 %v1741, 0.1
  %v1750 = vmul.f32 %v1742, 0.1
  %v1751 = vld [vmem:[%s6] sm:$0xff]
  %v1753 = vsel %vm540, %v1751, 0
  %1755 = vmatpush.msra.mxu0 0.0
  %1756 = vmatpush.msra.mxu0 0.0
  %1757 = vmatpush.msra.mxu0 0.0
  %1758 = vmatpush.msra.mxu0 0.0
  %1759 = vmatpush.msra.mxu0 0.0
  %1760 = vmatpush.msra.mxu0 0.0
  %1761 = vmatpush.msra.mxu0 0.0
  %1762 = vmatpush.msra.mxu0 0.0
  %1763 = vmatpush.msra.mxu0 0.0
  %1764 = vmatpush.msra.mxu0 0.0
  %1765 = vmatpush.msra.mxu0 0.0
  %1766 = vmatpush.msra.mxu0 0.0
  %1767 = vmatpush.msra.mxu0 0.0
  %1768 = vmatpush.msra.mxu0 0.0
  %1769 = vmatpush.msra.mxu0 0.0
  %1770 = vmatpush.msra.mxu0 %v1743
  %1771 = vmatmul.f32.gmra.mxu0 %v1753
  %v1772 = vpop.f32.mrf.mxu0
  %v1773 = vadd.f32 0.0, %v1772
  %1774 = vdwg.mxu0
  %1775 = vmatpush.msra.mxu0 0.0
  %1776 = vmatpush.msra.mxu0 0.0
  %1777 = vmatpush.msra.mxu0 0.0
  %1778 = vmatpush.msra.mxu0 0.0
  %1779 = vmatpush.msra.mxu0 0.0
  %1780 = vmatpush.msra.mxu0 0.0
  %1781 = vmatpush.msra.mxu0 0.0
  %1782 = vmatpush.msra.mxu0 0.0
  %1783 = vmatpush.msra.mxu0 0.0
  %1784 = vmatpush.msra.mxu0 0.0
  %1785 = vmatpush.msra.mxu0 0.0
  %1786 = vmatpush.msra.mxu0 0.0
  %1787 = vmatpush.msra.mxu0 0.0
  %1788 = vmatpush.msra.mxu0 0.0
  %1789 = vmatpush.msra.mxu0 0.0
  %1790 = vmatpush.msra.mxu0 %v1744
  %1791 = vmatmul.f32.gmra.mxu0 %v1753
  %v1792 = vpop.f32.mrf.mxu0
  %v1793 = vadd.f32 0.0, %v1792
  %1794 = vdwg.mxu0
  %1795 = vmatpush.msra.mxu0 0.0
  %1796 = vmatpush.msra.mxu0 0.0
  %1797 = vmatpush.msra.mxu0 0.0
  %1798 = vmatpush.msra.mxu0 0.0
  %1799 = vmatpush.msra.mxu0 0.0
  %1800 = vmatpush.msra.mxu0 0.0
  %1801 = vmatpush.msra.mxu0 0.0
  %1802 = vmatpush.msra.mxu0 0.0
  %1803 = vmatpush.msra.mxu0 0.0
  %1804 = vmatpush.msra.mxu0 0.0
  %1805 = vmatpush.msra.mxu0 0.0
  %1806 = vmatpush.msra.mxu0 0.0
  %1807 = vmatpush.msra.mxu0 0.0
  %1808 = vmatpush.msra.mxu0 0.0
  %1809 = vmatpush.msra.mxu0 0.0
  %1810 = vmatpush.msra.mxu0 %v1745
  %1811 = vmatmul.f32.gmra.mxu0 %v1753
  %v1812 = vpop.f32.mrf.mxu0
  %v1813 = vadd.f32 0.0, %v1812
  %1814 = vdwg.mxu0
  %1815 = vmatpush.msra.mxu0 0.0
  %1816 = vmatpush.msra.mxu0 0.0
  %1817 = vmatpush.msra.mxu0 0.0
  %1818 = vmatpush.msra.mxu0 0.0
  %1819 = vmatpush.msra.mxu0 0.0
  %1820 = vmatpush.msra.mxu0 0.0
  %1821 = vmatpush.msra.mxu0 0.0
  %1822 = vmatpush.msra.mxu0 0.0
  %1823 = vmatpush.msra.mxu0 0.0
  %1824 = vmatpush.msra.mxu0 0.0
  %1825 = vmatpush.msra.mxu0 0.0
  %1826 = vmatpush.msra.mxu0 0.0
  %1827 = vmatpush.msra.mxu0 0.0
  %1828 = vmatpush.msra.mxu0 0.0
  %1829 = vmatpush.msra.mxu0 0.0
  %1830 = vmatpush.msra.mxu0 %v1746
  %1831 = vmatmul.f32.gmra.mxu0 %v1753
  %v1832 = vpop.f32.mrf.mxu0
  %v1833 = vadd.f32 0.0, %v1832
  %1834 = vdwg.mxu0
  %1835 = vmatpush.msra.mxu0 0.0
  %1836 = vmatpush.msra.mxu0 0.0
  %1837 = vmatpush.msra.mxu0 0.0
  %1838 = vmatpush.msra.mxu0 0.0
  %1839 = vmatpush.msra.mxu0 0.0
  %1840 = vmatpush.msra.mxu0 0.0
  %1841 = vmatpush.msra.mxu0 0.0
  %1842 = vmatpush.msra.mxu0 0.0
  %1843 = vmatpush.msra.mxu0 0.0
  %1844 = vmatpush.msra.mxu0 0.0
  %1845 = vmatpush.msra.mxu0 0.0
  %1846 = vmatpush.msra.mxu0 0.0
  %1847 = vmatpush.msra.mxu0 0.0
  %1848 = vmatpush.msra.mxu0 0.0
  %1849 = vmatpush.msra.mxu0 0.0
  %1850 = vmatpush.msra.mxu0 %v1747
  %1851 = vmatmul.f32.gmra.mxu0 %v1753
  %v1852 = vpop.f32.mrf.mxu0
  %v1853 = vadd.f32 0.0, %v1852
  %1854 = vdwg.mxu0
  %1855 = vmatpush.msra.mxu0 0.0
  %1856 = vmatpush.msra.mxu0 0.0
  %1857 = vmatpush.msra.mxu0 0.0
  %1858 = vmatpush.msra.mxu0 0.0
  %1859 = vmatpush.msra.mxu0 0.0
  %1860 = vmatpush.msra.mxu0 0.0
  %1861 = vmatpush.msra.mxu0 0.0
  %1862 = vmatpush.msra.mxu0 0.0
  %1863 = vmatpush.msra.mxu0 0.0
  %1864 = vmatpush.msra.mxu0 0.0
  %1865 = vmatpush.msra.mxu0 0.0
  %1866 = vmatpush.msra.mxu0 0.0
  %1867 = vmatpush.msra.mxu0 0.0
  %1868 = vmatpush.msra.mxu0 0.0
  %1869 = vmatpush.msra.mxu0 0.0
  %1870 = vmatpush.msra.mxu0 %v1748
  %1871 = vmatmul.f32.gmra.mxu0 %v1753
  %v1872 = vpop.f32.mrf.mxu0
  %v1873 = vadd.f32 0.0, %v1872
  %1874 = vdwg.mxu0
  %1875 = vmatpush.msra.mxu0 0.0
  %1876 = vmatpush.msra.mxu0 0.0
  %1877 = vmatpush.msra.mxu0 0.0
  %1878 = vmatpush.msra.mxu0 0.0
  %1879 = vmatpush.msra.mxu0 0.0
  %1880 = vmatpush.msra.mxu0 0.0
  %1881 = vmatpush.msra.mxu0 0.0
  %1882 = vmatpush.msra.mxu0 0.0
  %1883 = vmatpush.msra.mxu0 0.0
  %1884 = vmatpush.msra.mxu0 0.0
  %1885 = vmatpush.msra.mxu0 0.0
  %1886 = vmatpush.msra.mxu0 0.0
  %1887 = vmatpush.msra.mxu0 0.0
  %1888 = vmatpush.msra.mxu0 0.0
  %1889 = vmatpush.msra.mxu0 0.0
  %1890 = vmatpush.msra.mxu0 %v1749
  %1891 = vmatmul.f32.gmra.mxu0 %v1753
  %v1892 = vpop.f32.mrf.mxu0
  %v1893 = vadd.f32 0.0, %v1892
  %1894 = vdwg.mxu0
  %1895 = vmatpush.msra.mxu0 0.0
  %1896 = vmatpush.msra.mxu0 0.0
  %1897 = vmatpush.msra.mxu0 0.0
  %1898 = vmatpush.msra.mxu0 0.0
  %1899 = vmatpush.msra.mxu0 0.0
  %1900 = vmatpush.msra.mxu0 0.0
  %1901 = vmatpush.msra.mxu0 0.0
  %1902 = vmatpush.msra.mxu0 0.0
  %1903 = vmatpush.msra.mxu0 0.0
  %1904 = vmatpush.msra.mxu0 0.0
  %1905 = vmatpush.msra.mxu0 0.0
  %1906 = vmatpush.msra.mxu0 0.0
  %1907 = vmatpush.msra.mxu0 0.0
  %1908 = vmatpush.msra.mxu0 0.0
  %1909 = vmatpush.msra.mxu0 0.0
  %1910 = vmatpush.msra.mxu0 %v1750
  %1911 = vmatmul.f32.gmra.mxu0 %v1753
  %v1912 = vpop.f32.mrf.mxu0
  %v1913 = vadd.f32 0.0, %v1912
  %1914 = vdwg.mxu0
  %1915 = vst [vmem:[%s7] sm:$0xff] %v1773
  %1916 = vst [vmem:[%s7 + $0x8] sm:$0xff] %v1793
  %1917 = vst [vmem:[%s7 + $0x10] sm:$0xff] %v1813
  %1918 = vst [vmem:[%s7 + $0x18] sm:$0xff] %v1833
  %1919 = vst [vmem:[%s7 + $0x20] sm:$0xff] %v1853
  %1920 = vst [vmem:[%s7 + $0x28] sm:$0xff] %v1873
  %1921 = vst [vmem:[%s7 + $0x30] sm:$0xff] %v1893
  %1922 = vst [vmem:[%s7 + $0x38] sm:$0xff] %v1913
  // Predicated region
  $region30: #{run.2} parent=0 // pred_check
    _
  $region31: #{run.2} parent=0 // pred_check_branch
    %1924 = sbr.rel (0) target = $region33
  $region32: #{run.2} parent=0 // pred_region
    _
  $region33: #{run.2} parent=0 // pred_fallthru
    _
  // Predicated region
  $region34: #{run.2} parent=0 // pred_check
    _
  $region35: #{run.2} parent=0 // pred_check_branch
    %1926 = sbr.rel (0) target = $region37
  $region36: #{run.2} parent=0 // pred_region
    _
  $region37: #{run.2} parent=0 // pred_fallthru
    _

</llo_original>
